<compile_context>
chip_gen: v5e
topology: v5e:2x2
jax: 0.10.0
libtpu: 0.0.40
codegen_flags: <defaults>
</compile_context>

<pallas_src>
import functools

import jax
import jax.numpy as jnp
from jax.experimental import pallas as pl
from jax.experimental.pallas import tpu as pltpu


def _round_up(x, m):
    return ((x + m - 1) // m) * m


def _pad2d(a, rows, cols):
    """Zero-pad a 2D array up to (rows, cols) (no-op if already that shape)."""
    r, c = a.shape
    if r == rows and c == cols:
        return a
    return jnp.pad(a, ((0, rows - r), (0, cols - c)))


def _device_defaults():
    """Generation-dependent tile / VMEM defaults."""
    kind = ""
    try:
        kind = jax.devices()[0].device_kind.lower()
    except Exception:  # pragma: no cover - defensive only
        pass
    if "v5" in kind or "v6" in kind:
        # 128 MiB VMEM, single TensorCore per chip: go big on tiles.
        return dict(tm=512, th=1024, vmem_limit_bytes=112 * 1024 * 1024,
                    two_core=False)
    if "v4" in kind or "v3" in kind or "v2" in kind:
        return dict(tm=512, th=1024, vmem_limit_bytes=96 * 1024 * 1024,
                    two_core=False)
    # v7x (or unknown): 64 MiB VMEM per TensorCore, 2 TCs per chip.
    return dict(tm=256, th=512, vmem_limit_bytes=56 * 1024 * 1024,
                two_core=True)


def _shrink_to_fit(tm, th, Dp, itemsize, row_align, vmem_limit):
    """Shrink (th, then tm) until the double-buffered working set fits."""
    def footprint(tm_, th_):
        inputs = 2 * (tm_ * Dp + Dp * 2 * th_ + th_ * Dp) * itemsize  # x, w13, w2
        outputs = 2 * tm_ * Dp * itemsize
        acc = tm_ * Dp * 4                                            # f32 scratch
        return inputs + outputs + acc

    budget = int(vmem_limit * 0.8)   # leave headroom for Mosaic internal scratch
    while th > 256 and footprint(tm, th) > budget:
        th = max(256, _round_up(th // 2, 256))
    while tm > row_align and footprint(tm, th) > budget:
        tm = max(row_align, _round_up(tm // 2, row_align))
    return tm, th


def _ffn_kernel(x_ref, w13_ref, w2_ref, o_ref, acc_ref, *, th, approx_silu):
    # x_ref:   (tm, Dp)       activation row tile
    # w13_ref: (Dp, 2*th)     fused [w1_tile | w3_tile], already (K, N) layout
    # w2_ref:  (th, Dp)       down-proj tile, already (K, N) layout
    # o_ref:   (tm, Dp)       output tile (resident across the k axis)
    # acc_ref: (tm, Dp) f32   accumulator scratch
    k = pl.program_id(1)

    @pl.when(k == 0)
    def _():
        acc_ref[...] = jnp.zeros_like(acc_ref)

    x = x_ref[...]

    # One fused gate/up projection: (tm, Dp) x (Dp, 2*th) -> (tm, 2*th).
    h13 = jnp.dot(x, w13_ref[...], preferred_element_type=jnp.float32)
    h1 = h13[:, :th]
    h3 = h13[:, th:]

    if approx_silu:
        # sigmoid = 1 / (1 + exp(-h1)); exp + approximate reciprocal both run
        # on the EUP slot, which is idle while the MXU streams vmatmuls.
        sig = pl.reciprocal(1.0 + jnp.exp(-h1), approx=True)
    else:
        sig = jax.nn.sigmoid(h1)
    h = (h1 * sig) * h3

    # Partial down-projection: (tm, th) x (th, Dp) -> (tm, Dp), accumulated.
    acc_ref[...] += jnp.dot(h.astype(w2_ref.dtype), w2_ref[...],
                            preferred_element_type=jnp.float32)

    @pl.when(k == pl.num_programs(1) - 1)
    def _():
        o_ref[...] = acc_ref[...].astype(o_ref.dtype)


def feed_forward(x, w1, w2, w3, *, tm=None, th=None, vmem_limit_bytes=None,
                 approx_silu=True):
    """x: (batch, seq, dim); w1, w3: (hidden, dim); w2: (dim, hidden).

    Matches PyTorch: w2(silu(w1(x)) * w3(x)) with dropout p = 0 (eval).
    Weight transpose / fusion below is one-time prep (amortized under jit)."""
    batch, seq, dim = x.shape
    hidden = w1.shape[0]
    M = batch * seq

    defaults = _device_defaults()
    tm = defaults["tm"] if tm is None else tm
    th = defaults["th"] if th is None else th
    vmem_limit_bytes = (defaults["vmem_limit_bytes"]
                        if vmem_limit_bytes is None else vmem_limit_bytes)
    two_core = defaults["two_core"]

    a_item = jnp.dtype(x.dtype).itemsize
    w_item = jnp.dtype(w1.dtype).itemsize
    row_align = 16 if a_item <= 2 else 8        # bf16 packs 16 rows per vreg

    Dp = _round_up(dim, 128)                    # lane-dense stores, no vst.msk

    # --- row tile -------------------------------------------------------------
    tm_eff = min(tm, _round_up(M, row_align))
    tm_eff = max(row_align, _round_up(tm_eff, row_align))
    # Avoid padding-driven extra row tiles (e.g. M=257 with tm=256 -> Mp=512).
    while tm_eff > row_align and (_round_up(M, tm_eff) - M) * 4 > M:
        tm_eff = max(row_align, _round_up(tm_eff // 2, row_align))
    # On v7x keep >= 2 row tiles so the "parallel" axis spans both TensorCores.
    if two_core and _round_up(M, tm_eff) // tm_eff < 2 and tm_eff >= 2 * row_align:
        tm_eff = max(row_align, _round_up(tm_eff // 2, row_align))

    # --- hidden (K-reduction) tile ---------------------------------------------
    th_eff = min(th, _round_up(hidden, 256))    # MXU-aligned hidden tile
    th_eff = max(256, _round_up(th_eff, 256))
    tm_eff, th_eff = _shrink_to_fit(tm_eff, th_eff, Dp, max(a_item, w_item),
                                    row_align, vmem_limit_bytes)

    Mp = _round_up(M, tm_eff)
    Hp = _round_up(hidden, th_eff)
    nk = Hp // th_eff
    n_row_tiles = Mp // tm_eff

    # --- pad activations; pre-transpose + fuse weights (one-time prep) ---------
    x2d = _pad2d(x.reshape(M, dim), Mp, Dp)
    w1t = _pad2d(w1, Hp, Dp).T                  # (Dp, Hp)  canonical (K, N)
    w3t = _pad2d(w3, Hp, Dp).T                  # (Dp, Hp)
    w2t = _pad2d(w2, Dp, Hp).T                  # (Hp, Dp)  canonical (K, N)
    # Interleave per-hidden-tile so each grid step reads ONE contiguous block:
    #   w13[:, 2*k*th : 2*(k+1)*th] == [w1 tile k | w3 tile k]
    w13 = jnp.stack(
        [w1t.reshape(Dp, nk, th_eff), w3t.reshape(Dp, nk, th_eff)], axis=2
    ).reshape(Dp, 2 * Hp)

    grid = (n_row_tiles, nk)

    flops = 6 * Mp * Dp * Hp                    # three matmuls
    bytes_accessed = (
        x2d.size * a_item                                   # activations, once
        + n_row_tiles * (w13.size + w2t.size) * w_item      # weights re-streamed
        + Mp * Dp * a_item)                                 # output
    cost = pl.CostEstimate(flops=int(flops), transcendentals=int(Mp * Hp),
                           bytes_accessed=int(bytes_accessed))

    kernel = functools.partial(_ffn_kernel, th=th_eff, approx_silu=approx_silu)

    out2d = pl.pallas_call(
        kernel,
        out_shape=jax.ShapeDtypeStruct((Mp, Dp), x.dtype),
        grid_spec=pltpu.PrefetchScalarGridSpec(
            num_scalar_prefetch=0,
            grid=grid,
            in_specs=[
                pl.BlockSpec((tm_eff, Dp), lambda i, k: (i, 0)),       # x rows
                pl.BlockSpec((Dp, 2 * th_eff), lambda i, k: (0, k)),   # [w1|w3]
                pl.BlockSpec((th_eff, Dp), lambda i, k: (k, 0)),       # w2
            ],
            out_specs=pl.BlockSpec((tm_eff, Dp), lambda i, k: (i, 0)),
            scratch_shapes=[pltpu.VMEM((tm_eff, Dp), jnp.float32)],
        ),
        compiler_params=pltpu.CompilerParams(
            dimension_semantics=("parallel", "arbitrary"),
            vmem_limit_bytes=vmem_limit_bytes,
        ),
        cost_estimate=cost,
    )(x2d, w13, w2t)

    # Strip padding; dropout p=0 -> identity.
    return out2d[:M, :dim].reshape(batch, seq, dim)


def feed_forward_ref(x, w1, w2, w3):
    """Pure-JAX reference matching the PyTorch forward (dropout p=0)."""
    h1 = x @ w1.T
    h3 = x @ w3.T
    h = jax.nn.silu(h1) * h3
    return h @ w2.T


if __name__ == "__main__":
    # LMConfig-like synthetic config: dim=64, multiple_of=64, dropout=0.0
    dim = 64
    multiple_of = 64
    hidden_dim = 4 * dim
    hidden_dim = int(2 * hidden_dim / 3)
    hidden_dim = multiple_of * ((hidden_dim + multiple_of - 1) // multiple_of)  # 192

    batch, seq = 2, 8

    key = jax.random.PRNGKey(0)
    kx, k1, k2, k3 = jax.random.split(key, 4)

    x = jax.random.normal(kx, (batch, seq, dim), dtype=jnp.float32)
    # PyTorch nn.Linear weight shapes: (out_features, in_features), no bias.
    w1 = jax.random.normal(k1, (hidden_dim, dim), dtype=jnp.float32) * (1.0 / dim ** 0.5)
    w2 = jax.random.normal(k2, (dim, hidden_dim), dtype=jnp.float32) * (1.0 / hidden_dim ** 0.5)
    w3 = jax.random.normal(k3, (hidden_dim, dim), dtype=jnp.float32) * (1.0 / dim ** 0.5)

    # Full-precision f32 matmuls for a tight numerical comparison (applies to
    # both the Pallas kernel trace and the pure-JAX reference).
    with jax.default_matmul_precision("highest"):
        # Exact-sigmoid path: tight check against the reference.
        out_exact = jax.block_until_ready(
            feed_forward(x, w1, w2, w3, approx_silu=False))
        # Default (production) path: EUP approximate reciprocal in the SiLU.
        out = jax.block_until_ready(feed_forward(x, w1, w2, w3))
        ref = feed_forward_ref(x, w1, w2, w3)

    assert out.shape == (batch, seq, dim)
    assert jnp.allclose(out_exact, ref, atol=1e-4, rtol=1e-4), "exact-path mismatch"
    assert jnp.allclose(out, ref, atol=2e-2, rtol=2e-2), "approx-path mismatch"

    print("KERNEL_OK")
</pallas_src>

<mosaic_0001>
module attributes {stable_mosaic.version = 11 : i64} {
  func.func @_ffn_kernel(%arg0: i32, %arg1: i32, %arg2: memref<8x128xf32, #tpu.memory_space<vmem>>, %arg3: memref<128x512xf32, #tpu.memory_space<vmem>>, %arg4: memref<256x128xf32, #tpu.memory_space<vmem>>, %arg5: memref<8x128xf32, #tpu.memory_space<vmem>>, %arg6: memref<8x128xf32, #tpu.memory_space<vmem>>) attributes {dimension_semantics = [#tpu.dimension_semantics<parallel>, #tpu.dimension_semantics<arbitrary>], iteration_bounds = array<i64: 2, 1>, scalar_prefetch = 0 : i64, scratch_operands = 1 : i64, tpu.core_type = #tpu.core_type<tc>, window_params = [{transform_indices = @transform_0, window_bounds = array<i64: 8, 128>}, {transform_indices = @transform_1, window_bounds = array<i64: 128, 512>}, {transform_indices = @transform_2, window_bounds = array<i64: 256, 128>}, {transform_indices = @transform_3, window_bounds = array<i64: 8, 128>}]} {
    %c0_i32 = arith.constant 0 : i32
    %0 = arith.cmpi eq, %arg1, %c0_i32 : i32
    %1 = arith.extui %0 : i1 to i32
    %c0_i32_0 = arith.constant 0 : i32
    %2 = arith.cmpi ne, %1, %c0_i32_0 : i32
    scf.if %2 {
      %cst_14 = arith.constant 0.000000e+00 : f32
      %23 = vector.broadcast %cst_14 : f32 to vector<8x128xf32>
      %c0_15 = arith.constant 0 : index
      %c0_16 = arith.constant 0 : index
      %24 = vector.load %arg6[%c0_15, %c0_16] : memref<8x128xf32, #tpu.memory_space<vmem>>, vector<8x128xf32>
      tpu.vector_store %arg6[%c0_15, %c0_16], %23 {strides = array<i32>} : memref<8x128xf32, #tpu.memory_space<vmem>>, vector<8x128xf32>,
    } else {
    }
    %c0 = arith.constant 0 : index
    %c0_1 = arith.constant 0 : index
    %3 = vector.load %arg2[%c0, %c0_1] : memref<8x128xf32, #tpu.memory_space<vmem>>, vector<8x128xf32>
    %c0_2 = arith.constant 0 : index
    %c0_3 = arith.constant 0 : index
    %4 = vector.load %arg3[%c0_2, %c0_3] : memref<128x512xf32, #tpu.memory_space<vmem>>, vector<128x512xf32>
    %cst = arith.constant dense<0.000000e+00> : vector<8x512xf32>
    %5 = tpu.matmul %3, %4, %cst {dimension_numbers = #tpu.dot_dimension_numbers<[1], [0], [0], [1], [0, 0, 1, 1], [], []>, precision = #tpu.contract_precision<fp32>} : vector<8x128xf32>, vector<128x512xf32>, vector<8x512xf32> -> vector<8x512xf32>
    %6 = vector.extract_strided_slice %5 {offsets = [0, 0], sizes = [8, 256], strides = [1, 1]} : vector<8x512xf32> to vector<8x256xf32>
    %7 = vector.extract_strided_slice %5 {offsets = [0, 256], sizes = [8, 256], strides = [1, 1]} : vector<8x512xf32> to vector<8x256xf32>
    %8 = arith.negf %6 : vector<8x256xf32>
    %9 = math.exp %8 : vector<8x256xf32>
    %cst_4 = arith.constant 1.000000e+00 : f32
    %10 = vector.broadcast %cst_4 : f32 to vector<8x256xf32>
    %11 = arith.addf %10, %9 : vector<8x256xf32>
    %12 = arith.divf %10, %11 : vector<8x256xf32>
    %13 = arith.mulf %6, %12 : vector<8x256xf32>
    %14 = arith.mulf %13, %7 : vector<8x256xf32>
    %c0_5 = arith.constant 0 : index
    %c0_6 = arith.constant 0 : index
    %15 = vector.load %arg6[%c0_5, %c0_6] : memref<8x128xf32, #tpu.memory_space<vmem>>, vector<8x128xf32>
    %c0_7 = arith.constant 0 : index
    %c0_8 = arith.constant 0 : index
    %16 = vector.load %arg4[%c0_7, %c0_8] : memref<256x128xf32, #tpu.memory_space<vmem>>, vector<256x128xf32>
    %cst_9 = arith.constant dense<0.000000e+00> : vector<8x128xf32>
    %17 = tpu.matmul %14, %16, %cst_9 {dimension_numbers = #tpu.dot_dimension_numbers<[1], [0], [0], [1], [0, 0, 1, 1], [], []>, precision = #tpu.contract_precision<fp32>} : vector<8x256xf32>, vector<256x128xf32>, vector<8x128xf32> -> vector<8x128xf32>
    %18 = arith.addf %15, %17 : vector<8x128xf32>
    %c0_10 = arith.constant 0 : index
    %c0_11 = arith.constant 0 : index
    %19 = vector.load %arg6[%c0_10, %c0_11] : memref<8x128xf32, #tpu.memory_space<vmem>>, vector<8x128xf32>
    tpu.vector_store %arg6[%c0_10, %c0_11], %18 {strides = array<i32>} : memref<8x128xf32, #tpu.memory_space<vmem>>, vector<8x128xf32>,
    %c0_i32_12 = arith.constant 0 : i32
    %20 = arith.cmpi eq, %arg1, %c0_i32_12 : i32
    %21 = arith.extui %20 : i1 to i32
    %c0_i32_13 = arith.constant 0 : i32
    %22 = arith.cmpi ne, %21, %c0_i32_13 : i32
    scf.if %22 {
      %c0_14 = arith.constant 0 : index
      %c0_15 = arith.constant 0 : index
      %23 = vector.load %arg6[%c0_14, %c0_15] : memref<8x128xf32, #tpu.memory_space<vmem>>, vector<8x128xf32>
      %c0_16 = arith.constant 0 : index
      %c0_17 = arith.constant 0 : index
      %24 = vector.load %arg5[%c0_16, %c0_17] : memref<8x128xf32, #tpu.memory_space<vmem>>, vector<8x128xf32>
      tpu.vector_store %arg5[%c0_16, %c0_17], %23 {strides = array<i32>} : memref<8x128xf32, #tpu.memory_space<vmem>>, vector<8x128xf32>,
    } else {
    }
    return
  }
  func.func @transform_0(%arg0: i32, %arg1: i32) -> (i32, i32) {
    %c0_i32 = arith.constant 0 : i32
    %c0_i32_0 = arith.constant 0 : i32
    return %arg0, %c0_i32 : i32, i32
  }
  func.func @transform_1(%arg0: i32, %arg1: i32) -> (i32, i32) {
    %c0_i32 = arith.constant 0 : i32
    %c0_i32_0 = arith.constant 0 : i32
    return %c0_i32, %arg1 : i32, i32
  }
  func.func @transform_2(%arg0: i32, %arg1: i32) -> (i32, i32) {
    %c0_i32 = arith.constant 0 : i32
    %c0_i32_0 = arith.constant 0 : i32
    return %arg1, %c0_i32 : i32, i32
  }
  func.func @transform_3(%arg0: i32, %arg1: i32) -> (i32, i32) {
    %c0_i32 = arith.constant 0 : i32
    %c0_i32_0 = arith.constant 0 : i32
    return %arg0, %c0_i32 : i32, i32
  }
}

</mosaic_0001>

<llo_original>
// kernel: tpu_custom_call.1
$region0: #{tpu_custom_call.1}
  #allocation0 [shape = 'u32[]', space=smem, size = 0x4, offset = 0x4, fixed_abs, tag = 'smem constant byte address 0x4 - core index']
  #allocation1 [shape = 'u32[72,128]{1,0:T(1,128)}', space=vmem, size = 0x9000, scoped, tag = 'internal scratch']
  #allocation2 [shape = 'f32[8,128]{1,0:T(8,128)}', space=vmem, size = 0x1000, scoped, tag = 'scratch operand']
  %s0 = inlined_call_operand.hbm [shape: f32[16,128], index: 0, kind: input, shape index: {}]
  %s1 = inlined_call_operand.hbm [shape: f32[128,512], index: 1, kind: input, shape index: {}]
  %s2 = inlined_call_operand.hbm [shape: f32[256,128], index: 2, kind: input, shape index: {}]
  %s3 = inlined_call_operand.hbm [shape: f32[16,128], index: 3, kind: output, shape index: {}]
  %s4 = sld [smem:[#allocation0]]
  $region65: #{tpu_custom_call.1} parent=0
    _
  %s6 = ssub.s32 1, %s4
  %s7 = scalar_select 0, %s6, %s4
  $region1: #{tpu_custom_call.1} parent=0
    #allocation3 [shape = 'u8[8192]{0}', space=vmem, size = 0x2000, scoped, tag = 'input window, operand 0']
    #allocation4 [shape = 's32[2]{0}', space=sflag, size = 0x8, scoped, tag = 'scoped memory for tpu_custom_call.1']
    #allocation5 [shape = 's32[2]{0}', space=sflag, size = 0x8, scoped, tag = 'scoped memory for tpu_custom_call.1']
    #allocation6 [shape = 'u8[262144]{0}', space=vmem, size = 0x40000, scoped, tag = 'input window, operand 1, single buffered']
    #allocation7 [shape = 's32[1]{0}', space=sflag, size = 0x4, scoped, tag = 'scoped memory for tpu_custom_call.1']
    #allocation8 [shape = 'u8[131072]{0}', space=vmem, size = 0x20000, scoped, tag = 'input window, operand 2, single buffered']
    #allocation9 [shape = 'u8[8192]{0}', space=vmem, size = 0x2000, scoped, tag = 'output window, operand 0']
    %8 = vsyncpa [#allocation4], 0
    %s9 = scalar_lea.sflag [#allocation4], 1
    %10 = vsyncpa %s9, 0
    %11 = vsyncpa [#allocation7], 0
    %12 = vsyncpa [#allocation5], 0
    %s13 = scalar_lea.sflag [#allocation5], 1
    %14 = vsyncpa %s13, 0
    loop: start=0, step=1, limit=4
    $region2: #{tpu_custom_call.1} parent=1 // loop_pre_header
      _
    $region3: #{tpu_custom_call.1} parent=1 // loop_header
      %s16 = sphi 0, %s20
      %p17 = scmp.ge.s32.totalorder %s16, 4
      %s23 = sphi 0, %s35
      %s24 = sphi 0, %s31
      %s25 = sphi 0, %s23
      %s26 = sphi 0, %s24
      %s27 = sphi 0, %s25
      %s28 = sphi 0, %s26
      %s38 = sphi 0, %s40
      %s41 = sphi 0, %s38
      %s42 = sphi 0, %s41
      %s58 = sphi 0, %s42
      %s64 = sphi 0, %s66
      %s67 = sphi 0, %s64
      %s68 = sphi 0, %s67
      %s84 = sphi 0, %s68
      %s90 = sphi 0, %s92
      %s93 = sphi 0, %s90
      %s94 = sphi 0, %s93
      %s110 = sphi 0, %s94
      %s116 = sphi 0, %s118
      %s119 = sphi 0, %s116
      %s120 = sphi 0, %s119
      %s136 = sphi 0, %s120
    $region4: #{tpu_custom_call.1} parent=1 // loop_header_branch
      %19 = sbr.rel (%p17) target = $region8
    $region5: #{tpu_custom_call.1} parent=1 // loop_body
      %s21 = ssub.s32 %s16, 1
      %s22 = ssub.s32 %s16, 2
      %s29 = sadd.s32 1, %s24
      %p30 = scmp.ge.s32.totalorder %s29, 1
      %s31 = scalar_select %p30, 0, %s29
      %s32 = sadd.s32 1, %s23
      %s33 = scalar_select %p30, %s32, %s23
      %p34 = scmp.ge.s32.totalorder %s33, 2
      %s35 = scalar_select %p34, 0, %s33
      %s36 = ssub.s32 %s23, %s35
      %p37 = scmp.eq.s32.totalorder %s36, 0
      %s39 = sadd.s32 %s38, 1
      %s40 = scalar_select %p37, %s38, %s39
      %p43 = pneg %p37
      %p44 = scmp.eq.s32.totalorder %s16, 1
      %p45 = por %p43, %p44
      %p46 = scmp.ne.s32.totalorder %s38, %s41
      %p47 = scmp.eq.s32.totalorder %s16, 0
      %p48 = por %p46, %p47
      %p49 = scmp.ne.s32.totalorder %s38, %s41
      %p50 = scmp.eq.s32.totalorder %s21, 1
      %p51 = por %p49, %p50
      %p52 = scmp.ne.s32.totalorder %s41, %s42
      %p53 = scmp.eq.s32.totalorder %s21, 0
      %p54 = por %p52, %p53
      %p55 = scmp.ne.s32.totalorder %s41, %s42
      %p56 = scmp.eq.s32.totalorder %s22, 1
      %p57 = por %p55, %p56
      %p59 = scmp.ne.s32.totalorder %s42, %s58
      %p60 = scmp.eq.s32.totalorder %s22, 0
      %p61 = por %p59, %p60
      %s62 = ssub.s32 %s24, %s31
      %p63 = scmp.eq.s32.totalorder %s62, 0
      %s65 = sadd.s32 %s64, 1
      %s66 = scalar_select %p63, %s64, %s65
      %p69 = pneg %p63
      %p70 = scmp.eq.s32.totalorder %s16, 1
      %p71 = por %p69, %p70
      %p72 = scmp.ne.s32.totalorder %s64, %s67
      %p73 = scmp.eq.s32.totalorder %s16, 0
      %p74 = por %p72, %p73
      %p75 = scmp.ne.s32.totalorder %s64, %s67
      %p76 = scmp.eq.s32.totalorder %s21, 1
      %p77 = por %p75, %p76
      %p78 = scmp.ne.s32.totalorder %s67, %s68
      %p79 = scmp.eq.s32.totalorder %s21, 0
      %p80 = por %p78, %p79
      %p81 = scmp.ne.s32.totalorder %s67, %s68
      %p82 = scmp.eq.s32.totalorder %s22, 1
      %p83 = por %p81, %p82
      %p85 = scmp.ne.s32.totalorder %s68, %s84
      %p86 = scmp.eq.s32.totalorder %s22, 0
      %p87 = por %p85, %p86
      %s88 = ssub.s32 %s24, %s31
      %p89 = scmp.eq.s32.totalorder %s88, 0
      %s91 = sadd.s32 %s90, 1
      %s92 = scalar_select %p89, %s90, %s91
      %p95 = pneg %p89
      %p96 = scmp.eq.s32.totalorder %s16, 1
      %p97 = por %p95, %p96
      %p98 = scmp.ne.s32.totalorder %s90, %s93
      %p99 = scmp.eq.s32.totalorder %s16, 0
      %p100 = por %p98, %p99
      %p101 = scmp.ne.s32.totalorder %s90, %s93
      %p102 = scmp.eq.s32.totalorder %s21, 1
      %p103 = por %p101, %p102
      %p104 = scmp.ne.s32.totalorder %s93, %s94
      %p105 = scmp.eq.s32.totalorder %s21, 0
      %p106 = por %p104, %p105
      %p107 = scmp.ne.s32.totalorder %s93, %s94
      %p108 = scmp.eq.s32.totalorder %s22, 1
      %p109 = por %p107, %p108
      %p111 = scmp.ne.s32.totalorder %s94, %s110
      %p112 = scmp.eq.s32.totalorder %s22, 0
      %p113 = por %p111, %p112
      %s114 = ssub.s32 %s23, %s35
      %p115 = scmp.eq.s32.totalorder %s114, 0
      %s117 = sadd.s32 %s116, 1
      %s118 = scalar_select %p115, %s116, %s117
      %p121 = pneg %p115
      %p122 = scmp.eq.s32.totalorder %s16, 1
      %p123 = por %p121, %p122
      %p124 = scmp.ne.s32.totalorder %s116, %s119
      %p125 = scmp.eq.s32.totalorder %s16, 0
      %p126 = por %p124, %p125
      %p127 = scmp.ne.s32.totalorder %s116, %s119
      %p128 = scmp.eq.s32.totalorder %s21, 1
      %p129 = por %p127, %p128
      %p130 = scmp.ne.s32.totalorder %s119, %s120
      %p131 = scmp.eq.s32.totalorder %s21, 0
      %p132 = por %p130, %p131
      %p133 = scmp.ne.s32.totalorder %s119, %s120
      %p134 = scmp.eq.s32.totalorder %s22, 1
      %p135 = por %p133, %p134
      %p137 = scmp.ne.s32.totalorder %s120, %s136
      %p138 = scmp.eq.s32.totalorder %s22, 0
      %p139 = por %p137, %p138
      %p140 = scmp.le.s32.totalorder 1, %s16
      %p141 = scmp.lt.s32.totalorder %s16, 3
      %p142 = pnand %p140, %p141
      %p143 = pneg %p142
      // Predicated region
      $region9: #{tpu_custom_call.1} parent=5 // pred_check
        _
      $region10: #{tpu_custom_call.1} parent=5 // pred_check_branch
        %145 = sbr.rel (%p142) target = $region12
      $region11: #{tpu_custom_call.1} parent=5 // pred_region
        %s146 = ssub.s32 %s16, 1
        // Predicated region
        $region13: #{tpu_custom_call.1} parent=11 // pred_check
          %p147 = pneg %p80
        $region14: #{tpu_custom_call.1} parent=11 // pred_check_branch
          %149 = sbr.rel (%p147) target = $region16
        $region15: #{tpu_custom_call.1} parent=11 // pred_region
          %s150 = smul.u32 4, %s26
          %152 = vsyncadd [#allocation7], 0
          %s153 = smul.addr %s150, 8
          %s154 = scalar_lea.hbm %s1, %s153
          %s155 = sshll.u32 %s154, 4
          %s156 = int_to_ptr.hbm [resolvable:$true] %s155
          %s157 = sshll.u32 [#allocation6], 4
          %s158 = int_to_ptr.vmem [resolvable:$true] %s157
          %163 = dma.hbm_to_vmem [thread:$0]  %s156, 8192, %s158, [#allocation7], 512, 512, 32
        $region16: #{tpu_custom_call.1} parent=11 // pred_fallthru
          _
        // Predicated region
        $region17: #{tpu_custom_call.1} parent=11 // pred_check
          %p164 = pneg %p106
        $region18: #{tpu_custom_call.1} parent=11 // pred_check_branch
          %166 = sbr.rel (%p164) target = $region20
        $region19: #{tpu_custom_call.1} parent=11 // pred_region
          %s167 = smul.u32 32, %s26
          %169 = vsyncadd [#allocation7], 0
          %s170 = smul.addr %s167, 8
          %s171 = scalar_lea.hbm %s2, %s170
          %s172 = sshll.u32 %s171, 4
          %s173 = int_to_ptr.hbm [resolvable:$true] %s172
          %s174 = sshll.u32 [#allocation8], 4
          %s175 = int_to_ptr.vmem [resolvable:$true] %s174
          %180 = dma.hbm_to_vmem [thread:$0]  %s173, 4096, %s175, [#allocation7], 128, 128, 8
        $region20: #{tpu_custom_call.1} parent=11 // pred_fallthru
          _
      $region12: #{tpu_custom_call.1} parent=5 // pred_fallthru
        _
      %p181 = scmp.lt.s32.totalorder %s16, 2
      // Predicated region
      $region21: #{tpu_custom_call.1} parent=5 // pred_check
        %p182 = pneg %p181
      $region22: #{tpu_custom_call.1} parent=5 // pred_check_branch
        %184 = sbr.rel (%p182) target = $region24
      $region23: #{tpu_custom_call.1} parent=5 // pred_region
        // Predicated region
        $region25: #{tpu_custom_call.1} parent=23 // pred_check
          %p185 = pneg %p48
        $region26: #{tpu_custom_call.1} parent=23 // pred_check_branch
          %187 = sbr.rel (%p185) target = $region28
        $region27: #{tpu_custom_call.1} parent=23 // pred_region
          %s188 = sand.u32 %s38, 1
          %s189 = scalar_lea.sflag [#allocation4], %s188
          %s190 = sand.u32 %s38, 1
          %s191 = smul.addr %s190, 8
          %s192 = scalar_lea.vmem [#allocation3], %s191
          %194 = vsyncadd %s189, 0
          %s195 = smul.addr %s23, 8
          %s196 = scalar_lea.hbm %s0, %s195
          %s198 = sshll.u32 %s196, 4
          %s199 = int_to_ptr.hbm [resolvable:$true] %s198
          %s200 = sshll.u32 %s192, 4
          %s201 = int_to_ptr.vmem [resolvable:$true] %s200
          %203 = dma.hbm_to_vmem [thread:$0]  %s199, 128, %s201, %s189
        $region28: #{tpu_custom_call.1} parent=23 // pred_fallthru
          _
      $region24: #{tpu_custom_call.1} parent=5 // pred_fallthru
        _
      %p204 = scmp.le.s32.totalorder 1, %s16
      %p205 = scmp.lt.s32.totalorder %s16, 3
      %p206 = pnand %p204, %p205
      %p207 = pneg %p206
      // Predicated region
      $region29: #{tpu_custom_call.1} parent=5 // pred_check
        _
      $region30: #{tpu_custom_call.1} parent=5 // pred_check_branch
        %209 = sbr.rel (%p206) target = $region32
      $region31: #{tpu_custom_call.1} parent=5 // pred_region
        %s210 = ssub.s32 %s16, 1
        %s211 = sand.u32 %s41, 1
        %s212 = scalar_lea.sflag [#allocation4], %s211
        %s213 = sand.u32 %s41, 1
        %s214 = smul.addr %s213, 8
        %s215 = scalar_lea.vmem [#allocation3], %s214
        // Predicated region
        $region33: #{tpu_custom_call.1} parent=31 // pred_check
          %p216 = pneg %p54
        $region34: #{tpu_custom_call.1} parent=31 // pred_check_branch
          %218 = sbr.rel (%p216) target = $region36
        $region35: #{tpu_custom_call.1} parent=31 // pred_region
          %220 = dma.done %s212, 128
        $region36: #{tpu_custom_call.1} parent=31 // pred_fallthru
          _
        // Predicated region
        $region37: #{tpu_custom_call.1} parent=31 // pred_check
          %p221 = pneg %p80
        $region38: #{tpu_custom_call.1} parent=31 // pred_check_branch
          %223 = sbr.rel (%p221) target = $region40
        $region39: #{tpu_custom_call.1} parent=31 // pred_region
          %225 = dma.done [#allocation7], 8192
        $region40: #{tpu_custom_call.1} parent=31 // pred_fallthru
          _
        // Predicated region
        $region41: #{tpu_custom_call.1} parent=31 // pred_check
          %p226 = pneg %p106
        $region42: #{tpu_custom_call.1} parent=31 // pred_check_branch
          %228 = sbr.rel (%p226) target = $region44
        $region43: #{tpu_custom_call.1} parent=31 // pred_region
          %230 = dma.done [#allocation7], 4096
        $region44: #{tpu_custom_call.1} parent=31 // pred_fallthru
          _
        %s231 = sand.u32 %s41, 1
        %s232 = scalar_lea.sflag [#allocation4], %s231
        %s233 = sand.u32 %s41, 1
        %s234 = smul.addr %s233, 8
        %s235 = scalar_lea.vmem [#allocation3], %s234
        %p236 = pneg %p54
        %p237 = pneg %p51
        %p238 = pneg %p80
        %p239 = pneg %p77
        %p240 = pneg %p106
        %p241 = pneg %p103
        %p242 = pneg %p132
        %p243 = pneg %p129
        %s244 = sand.u32 %s119, 1
        %s245 = scalar_lea.sflag [#allocation5], %s244
        %s246 = sand.u32 %s119, 1
        %s247 = smul.addr %s246, 8
        %s248 = scalar_lea.vmem [#allocation9], %s247
        %s249 = smul.u32 4, %s26
        %s250 = smul.u32 32, %s26
        %p251 = scmp.eq.s32.totalorder %s26, 0
        // Predicated region
        $region45: #{tpu_custom_call.1} parent=31 // pred_check
          %p252 = pneg %p251
        $region46: #{tpu_custom_call.1} parent=31 // pred_check_branch
          %254 = sbr.rel (%p252) target = $region48
        $region47: #{tpu_custom_call.1} parent=31 // pred_region
          %255 = vst [vmem:[#allocation2] sm:$0xff] 0.0
        $region48: #{tpu_custom_call.1} parent=31 // pred_fallthru
          _
        %v256 = vld [vmem:[%s215] sm:$0xff]
        %v257 = vld [vmem:[#allocation6] sm:$0xff]
        %v258 = vld [vmem:[#allocation6 + $0x8] sm:$0xff]
        %v259 = vld [vmem:[#allocation6 + $0x10] sm:$0xff]
        %v260 = vld [vmem:[#allocation6 + $0x18] sm:$0xff]
        %v261 = vld [vmem:[#allocation6 + $0x20] sm:$0xff]
        %v262 = vld [vmem:[#allocation6 + $0x28] sm:$0xff]
        %v263 = vld [vmem:[#allocation6 + $0x30] sm:$0xff]
        %v264 = vld [vmem:[#allocation6 + $0x38] sm:$0xff]
        %v265 = vld [vmem:[#allocation6 + $0x40] sm:$0xff]
        %v266 = vld [vmem:[#allocation6 + $0x48] sm:$0xff]
        %v267 = vld [vmem:[#allocation6 + $0x50] sm:$0xff]
        %v268 = vld [vmem:[#allocation6 + $0x58] sm:$0xff]
        %v269 = vld [vmem:[#allocation6 + $0x60] sm:$0xff]
        %v270 = vld [vmem:[#allocation6 + $0x68] sm:$0xff]
        %v271 = vld [vmem:[#allocation6 + $0x70] sm:$0xff]
        %v272 = vld [vmem:[#allocation6 + $0x78] sm:$0xff]
        %v273 = vld [vmem:[#allocation6 + $0x80] sm:$0xff]
        %v274 = vld [vmem:[#allocation6 + $0x88] sm:$0xff]
        %v275 = vld [vmem:[#allocation6 + $0x90] sm:$0xff]
        %v276 = vld [vmem:[#allocation6 + $0x98] sm:$0xff]
        %v277 = vld [vmem:[#allocation6 + $0xa0] sm:$0xff]
        %v278 = vld [vmem:[#allocation6 + $0xa8] sm:$0xff]
        %v279 = vld [vmem:[#allocation6 + $0xb0] sm:$0xff]
        %v280 = vld [vmem:[#allocation6 + $0xb8] sm:$0xff]
        %v281 = vld [vmem:[#allocation6 + $0xc0] sm:$0xff]
        %v282 = vld [vmem:[#allocation6 + $0xc8] sm:$0xff]
        %v283 = vld [vmem:[#allocation6 + $0xd0] sm:$0xff]
        %v284 = vld [vmem:[#allocation6 + $0xd8] sm:$0xff]
        %v285 = vld [vmem:[#allocation6 + $0xe0] sm:$0xff]
        %v286 = vld [vmem:[#allocation6 + $0xe8] sm:$0xff]
        %v287 = vld [vmem:[#allocation6 + $0xf0] sm:$0xff]
        %v288 = vld [vmem:[#allocation6 + $0xf8] sm:$0xff]
        %v289 = vld [vmem:[#allocation6 + $0x100] sm:$0xff]
        %v290 = vld [vmem:[#allocation6 + $0x108] sm:$0xff]
        %v291 = vld [vmem:[#allocation6 + $0x110] sm:$0xff]
        %v292 = vld [vmem:[#allocation6 + $0x118] sm:$0xff]
        %v293 = vld [vmem:[#allocation6 + $0x120] sm:$0xff]
        %v294 = vld [vmem:[#allocation6 + $0x128] sm:$0xff]
        %v295 = vld [vmem:[#allocation6 + $0x130] sm:$0xff]
        %v296 = vld [vmem:[#allocation6 + $0x138] sm:$0xff]
        %v297 = vld [vmem:[#allocation6 + $0x140] sm:$0xff]
        %v298 = vld [vmem:[#allocation6 + $0x148] sm:$0xff]
        %v299 = vld [vmem:[#allocation6 + $0x150] sm:$0xff]
        %v300 = vld [vmem:[#allocation6 + $0x158] sm:$0xff]
        %v301 = vld [vmem:[#allocation6 + $0x160] sm:$0xff]
        %v302 = vld [vmem:[#allocation6 + $0x168] sm:$0xff]
        %v303 = vld [vmem:[#allocation6 + $0x170] sm:$0xff]
        %v304 = vld [vmem:[#allocation6 + $0x178] sm:$0xff]
        %v305 = vld [vmem:[#allocation6 + $0x180] sm:$0xff]
        %v306 = vld [vmem:[#allocation6 + $0x188] sm:$0xff]
        %v307 = vld [vmem:[#allocation6 + $0x190] sm:$0xff]
        %v308 = vld [vmem:[#allocation6 + $0x198] sm:$0xff]
        %v309 = vld [vmem:[#allocation6 + $0x1a0] sm:$0xff]
        %v310 = vld [vmem:[#allocation6 + $0x1a8] sm:$0xff]
        %v311 = vld [vmem:[#allocation6 + $0x1b0] sm:$0xff]
        %v312 = vld [vmem:[#allocation6 + $0x1b8] sm:$0xff]
        %v313 = vld [vmem:[#allocation6 + $0x1c0] sm:$0xff]
        %v314 = vld [vmem:[#allocation6 + $0x1c8] sm:$0xff]
        %v315 = vld [vmem:[#allocation6 + $0x1d0] sm:$0xff]
        %v316 = vld [vmem:[#allocation6 + $0x1d8] sm:$0xff]
        %v317 = vld [vmem:[#allocation6 + $0x1e0] sm:$0xff]
        %v318 = vld [vmem:[#allocation6 + $0x1e8] sm:$0xff]
        %v319 = vld [vmem:[#allocation6 + $0x1f0] sm:$0xff]
        %v320 = vld [vmem:[#allocation6 + $0x1f8] sm:$0xff]
        %v321 = vand.u32 %v317, 4294901760
        %322 = vmatpush.msra.mxu0 %v321
        %v323 = vand.u32 %v313, 4294901760
        %324 = vmatpush.msra.mxu0 %v323
        %v325 = vand.u32 %v309, 4294901760
        %326 = vmatpush.msra.mxu0 %v325
        %v327 = vand.u32 %v305, 4294901760
        %328 = vmatpush.msra.mxu0 %v327
        %v329 = vand.u32 %v301, 4294901760
        %330 = vmatpush.msra.mxu0 %v329
        %v331 = vand.u32 %v297, 4294901760
        %332 = vmatpush.msra.mxu0 %v331
        %v333 = vand.u32 %v293, 4294901760
        %334 = vmatpush.msra.mxu0 %v333
        %v335 = vand.u32 %v289, 4294901760
        %336 = vmatpush.msra.mxu0 %v335
        %v337 = vand.u32 %v285, 4294901760
        %338 = vmatpush.msra.mxu0 %v337
        %v339 = vand.u32 %v281, 4294901760
        %340 = vmatpush.msra.mxu0 %v339
        %v341 = vand.u32 %v277, 4294901760
        %342 = vmatpush.msra.mxu0 %v341
        %v343 = vand.u32 %v273, 4294901760
        %344 = vmatpush.msra.mxu0 %v343
        %v345 = vand.u32 %v269, 4294901760
        %346 = vmatpush.msra.mxu0 %v345
        %v347 = vand.u32 %v265, 4294901760
        %348 = vmatpush.msra.mxu0 %v347
        %v349 = vand.u32 %v261, 4294901760
        %350 = vmatpush.msra.mxu0 %v349
        %v351 = vand.u32 %v257, 4294901760
        %352 = vmatpush.msra.mxu0 %v351
        %v353 = vand.u32 %v256, 4294901760
        %v354 = vsub.f32 %v256, %v353
        %v355 = vand.u32 %v354, 4294901760
        %v356 = vsub.f32 %v354, %v355
        %v357 = vand.u32 %v356, 4294901760
        %358 = vmatmul.f32.gmra.mxu0 %v357
        %v359 = vpop.f32.mrf.mxu0
        %v360 = vadd.f32 0.0, %v359
        %361 = vdwg.mxu0
        %v362 = vand.u32 %v317, 4294901760
        %v363 = vsub.f32 %v317, %v362
        %v364 = vand.u32 %v363, 4294901760
        %v365 = vsub.f32 %v363, %v364
        %v366 = vand.u32 %v365, 4294901760
        %367 = vmatpush.msra.mxu0 %v366
        %v368 = vand.u32 %v313, 4294901760
        %v369 = vsub.f32 %v313, %v368
        %v370 = vand.u32 %v369, 4294901760
        %v371 = vsub.f32 %v369, %v370
        %v372 = vand.u32 %v371, 4294901760
        %373 = vmatpush.msra.mxu0 %v372
        %v374 = vand.u32 %v309, 4294901760
        %v375 = vsub.f32 %v309, %v374
        %v376 = vand.u32 %v375, 4294901760
        %v377 = vsub.f32 %v375, %v376
        %v378 = vand.u32 %v377, 4294901760
        %379 = vmatpush.msra.mxu0 %v378
        %v380 = vand.u32 %v305, 4294901760
        %v381 = vsub.f32 %v305, %v380
        %v382 = vand.u32 %v381, 4294901760
        %v383 = vsub.f32 %v381, %v382
        %v384 = vand.u32 %v383, 4294901760
        %385 = vmatpush.msra.mxu0 %v384
        %v386 = vand.u32 %v301, 4294901760
        %v387 = vsub.f32 %v301, %v386
        %v388 = vand.u32 %v387, 4294901760
        %v389 = vsub.f32 %v387, %v388
        %v390 = vand.u32 %v389, 4294901760
        %391 = vmatpush.msra.mxu0 %v390
        %v392 = vand.u32 %v297, 4294901760
        %v393 = vsub.f32 %v297, %v392
        %v394 = vand.u32 %v393, 4294901760
        %v395 = vsub.f32 %v393, %v394
        %v396 = vand.u32 %v395, 4294901760
        %397 = vmatpush.msra.mxu0 %v396
        %v398 = vand.u32 %v293, 4294901760
        %v399 = vsub.f32 %v293, %v398
        %v400 = vand.u32 %v399, 4294901760
        %v401 = vsub.f32 %v399, %v400
        %v402 = vand.u32 %v401, 4294901760
        %403 = vmatpush.msra.mxu0 %v402
        %v404 = vand.u32 %v289, 4294901760
        %v405 = vsub.f32 %v289, %v404
        %v406 = vand.u32 %v405, 4294901760
        %v407 = vsub.f32 %v405, %v406
        %v408 = vand.u32 %v407, 4294901760
        %409 = vmatpush.msra.mxu0 %v408
        %v410 = vand.u32 %v285, 4294901760
        %v411 = vsub.f32 %v285, %v410
        %v412 = vand.u32 %v411, 4294901760
        %v413 = vsub.f32 %v411, %v412
        %v414 = vand.u32 %v413, 4294901760
        %415 = vmatpush.msra.mxu0 %v414
        %v416 = vand.u32 %v281, 4294901760
        %v417 = vsub.f32 %v281, %v416
        %v418 = vand.u32 %v417, 4294901760
        %v419 = vsub.f32 %v417, %v418
        %v420 = vand.u32 %v419, 4294901760
        %421 = vmatpush.msra.mxu0 %v420
        %v422 = vand.u32 %v277, 4294901760
        %v423 = vsub.f32 %v277, %v422
        %v424 = vand.u32 %v423, 4294901760
        %v425 = vsub.f32 %v423, %v424
        %v426 = vand.u32 %v425, 4294901760
        %427 = vmatpush.msra.mxu0 %v426
        %v428 = vand.u32 %v273, 4294901760
        %v429 = vsub.f32 %v273, %v428
        %v430 = vand.u32 %v429, 4294901760
        %v431 = vsub.f32 %v429, %v430
        %v432 = vand.u32 %v431, 4294901760
        %433 = vmatpush.msra.mxu0 %v432
        %v434 = vand.u32 %v269, 4294901760
        %v435 = vsub.f32 %v269, %v434
        %v436 = vand.u32 %v435, 4294901760
        %v437 = vsub.f32 %v435, %v436
        %v438 = vand.u32 %v437, 4294901760
        %439 = vmatpush.msra.mxu0 %v438
        %v440 = vand.u32 %v265, 4294901760
        %v441 = vsub.f32 %v265, %v440
        %v442 = vand.u32 %v441, 4294901760
        %v443 = vsub.f32 %v441, %v442
        %v444 = vand.u32 %v443, 4294901760
        %445 = vmatpush.msra.mxu0 %v444
        %v446 = vand.u32 %v261, 4294901760
        %v447 = vsub.f32 %v261, %v446
        %v448 = vand.u32 %v447, 4294901760
        %v449 = vsub.f32 %v447, %v448
        %v450 = vand.u32 %v449, 4294901760
        %451 = vmatpush.msra.mxu0 %v450
        %v452 = vand.u32 %v257, 4294901760
        %v453 = vsub.f32 %v257, %v452
        %v454 = vand.u32 %v453, 4294901760
        %v455 = vsub.f32 %v453, %v454
        %v456 = vand.u32 %v455, 4294901760
        %457 = vmatpush.msra.mxu0 %v456
        %v458 = vand.u32 %v256, 4294901760
        %459 = vmatmul.f32.gmra.mxu0 %v458
        %v460 = vpop.f32.mrf.mxu0
        %v461 = vadd.f32 %v360, %v460
        %462 = vdwg.mxu0
        %v463 = vand.u32 %v317, 4294901760
        %v464 = vsub.f32 %v317, %v463
        %465 = vmatpush.msra.mxu0 %v464
        %v466 = vand.u32 %v313, 4294901760
        %v467 = vsub.f32 %v313, %v466
        %468 = vmatpush.msra.mxu0 %v467
        %v469 = vand.u32 %v309, 4294901760
        %v470 = vsub.f32 %v309, %v469
        %471 = vmatpush.msra.mxu0 %v470
        %v472 = vand.u32 %v305, 4294901760
        %v473 = vsub.f32 %v305, %v472
        %474 = vmatpush.msra.mxu0 %v473
        %v475 = vand.u32 %v301, 4294901760
        %v476 = vsub.f32 %v301, %v475
        %477 = vmatpush.msra.mxu0 %v476
        %v478 = vand.u32 %v297, 4294901760
        %v479 = vsub.f32 %v297, %v478
        %480 = vmatpush.msra.mxu0 %v479
        %v481 = vand.u32 %v293, 4294901760
        %v482 = vsub.f32 %v293, %v481
        %483 = vmatpush.msra.mxu0 %v482
        %v484 = vand.u32 %v289, 4294901760
        %v485 = vsub.f32 %v289, %v484
        %486 = vmatpush.msra.mxu0 %v485
        %v487 = vand.u32 %v285, 4294901760
        %v488 = vsub.f32 %v285, %v487
        %489 = vmatpush.msra.mxu0 %v488
        %v490 = vand.u32 %v281, 4294901760
        %v491 = vsub.f32 %v281, %v490
        %492 = vmatpush.msra.mxu0 %v491
        %v493 = vand.u32 %v277, 4294901760
        %v494 = vsub.f32 %v277, %v493
        %495 = vmatpush.msra.mxu0 %v494
        %v496 = vand.u32 %v273, 4294901760
        %v497 = vsub.f32 %v273, %v496
        %498 = vmatpush.msra.mxu0 %v497
        %v499 = vand.u32 %v269, 4294901760
        %v500 = vsub.f32 %v269, %v499
        %501 = vmatpush.msra.mxu0 %v500
        %v502 = vand.u32 %v265, 4294901760
        %v503 = vsub.f32 %v265, %v502
        %504 = vmatpush.msra.mxu0 %v503
        %v505 = vand.u32 %v261, 4294901760
        %v506 = vsub.f32 %v261, %v505
        %507 = vmatpush.msra.mxu0 %v506
        %v508 = vand.u32 %v257, 4294901760
        %v509 = vsub.f32 %v257, %v508
        %510 = vmatpush.msra.mxu0 %v509
        %v511 = vand.u32 %v256, 4294901760
        %v512 = vsub.f32 %v256, %v511
        %513 = vmatmul.f32.gmra.mxu0 %v512
        %v514 = vpop.f32.mrf.mxu0
        %v515 = vadd.f32 %v461, %v514
        %516 = vdwg.mxu0
        %v517 = vand.u32 %v317, 4294901760
        %518 = vmatpush.msra.mxu0 %v517
        %v519 = vand.u32 %v313, 4294901760
        %520 = vmatpush.msra.mxu0 %v519
        %v521 = vand.u32 %v309, 4294901760
        %522 = vmatpush.msra.mxu0 %v521
        %v523 = vand.u32 %v305, 4294901760
        %524 = vmatpush.msra.mxu0 %v523
        %v525 = vand.u32 %v301, 4294901760
        %526 = vmatpush.msra.mxu0 %v525
        %v527 = vand.u32 %v297, 4294901760
        %528 = vmatpush.msra.mxu0 %v527
        %v529 = vand.u32 %v293, 4294901760
        %530 = vmatpush.msra.mxu0 %v529
        %v531 = vand.u32 %v289, 4294901760
        %532 = vmatpush.msra.mxu0 %v531
        %v533 = vand.u32 %v285, 4294901760
        %534 = vmatpush.msra.mxu0 %v533
        %v535 = vand.u32 %v281, 4294901760
        %536 = vmatpush.msra.mxu0 %v535
        %v537 = vand.u32 %v277, 4294901760
        %538 = vmatpush.msra.mxu0 %v537
        %v539 = vand.u32 %v273, 4294901760
        %540 = vmatpush.msra.mxu0 %v539
        %v541 = vand.u32 %v269, 4294901760
        %542 = vmatpush.msra.mxu0 %v541
        %v543 = vand.u32 %v265, 4294901760
        %544 = vmatpush.msra.mxu0 %v543
        %v545 = vand.u32 %v261, 4294901760
        %546 = vmatpush.msra.mxu0 %v545
        %v547 = vand.u32 %v257, 4294901760
        %548 = vmatpush.msra.mxu0 %v547
        %v549 = vand.u32 %v256, 4294901760
        %v550 = vsub.f32 %v256, %v549
        %v551 = vand.u32 %v550, 4294901760
        %552 = vmatmul.f32.gmra.mxu0 %v551
        %v553 = vpop.f32.mrf.mxu0
        %v554 = vadd.f32 %v515, %v553
        %555 = vdwg.mxu0
        %v556 = vand.u32 %v317, 4294901760
        %v557 = vsub.f32 %v317, %v556
        %v558 = vand.u32 %v557, 4294901760
        %559 = vmatpush.msra.mxu0 %v558
        %v560 = vand.u32 %v313, 4294901760
        %v561 = vsub.f32 %v313, %v560
        %v562 = vand.u32 %v561, 4294901760
        %563 = vmatpush.msra.mxu0 %v562
        %v564 = vand.u32 %v309, 4294901760
        %v565 = vsub.f32 %v309, %v564
        %v566 = vand.u32 %v565, 4294901760
        %567 = vmatpush.msra.mxu0 %v566
        %v568 = vand.u32 %v305, 4294901760
        %v569 = vsub.f32 %v305, %v568
        %v570 = vand.u32 %v569, 4294901760
        %571 = vmatpush.msra.mxu0 %v570
        %v572 = vand.u32 %v301, 4294901760
        %v573 = vsub.f32 %v301, %v572
        %v574 = vand.u32 %v573, 4294901760
        %575 = vmatpush.msra.mxu0 %v574
        %v576 = vand.u32 %v297, 4294901760
        %v577 = vsub.f32 %v297, %v576
        %v578 = vand.u32 %v577, 4294901760
        %579 = vmatpush.msra.mxu0 %v578
        %v580 = vand.u32 %v293, 4294901760
        %v581 = vsub.f32 %v293, %v580
        %v582 = vand.u32 %v581, 4294901760
        %583 = vmatpush.msra.mxu0 %v582
        %v584 = vand.u32 %v289, 4294901760
        %v585 = vsub.f32 %v289, %v584
        %v586 = vand.u32 %v585, 4294901760
        %587 = vmatpush.msra.mxu0 %v586
        %v588 = vand.u32 %v285, 4294901760
        %v589 = vsub.f32 %v285, %v588
        %v590 = vand.u32 %v589, 4294901760
        %591 = vmatpush.msra.mxu0 %v590
        %v592 = vand.u32 %v281, 4294901760
        %v593 = vsub.f32 %v281, %v592
        %v594 = vand.u32 %v593, 4294901760
        %595 = vmatpush.msra.mxu0 %v594
        %v596 = vand.u32 %v277, 4294901760
        %v597 = vsub.f32 %v277, %v596
        %v598 = vand.u32 %v597, 4294901760
        %599 = vmatpush.msra.mxu0 %v598
        %v600 = vand.u32 %v273, 4294901760
        %v601 = vsub.f32 %v273, %v600
        %v602 = vand.u32 %v601, 4294901760
        %603 = vmatpush.msra.mxu0 %v602
        %v604 = vand.u32 %v269, 4294901760
        %v605 = vsub.f32 %v269, %v604
        %v606 = vand.u32 %v605, 4294901760
        %607 = vmatpush.msra.mxu0 %v606
        %v608 = vand.u32 %v265, 4294901760
        %v609 = vsub.f32 %v265, %v608
        %v610 = vand.u32 %v609, 4294901760
        %611 = vmatpush.msra.mxu0 %v610
        %v612 = vand.u32 %v261, 4294901760
        %v613 = vsub.f32 %v261, %v612
        %v614 = vand.u32 %v613, 4294901760
        %615 = vmatpush.msra.mxu0 %v614
        %v616 = vand.u32 %v257, 4294901760
        %v617 = vsub.f32 %v257, %v616
        %v618 = vand.u32 %v617, 4294901760
        %619 = vmatpush.msra.mxu0 %v618
        %v620 = vand.u32 %v256, 4294901760
        %621 = vmatmul.f32.gmra.mxu0 %v620
        %v622 = vpop.f32.mrf.mxu0
        %v623 = vadd.f32 %v554, %v622
        %624 = vdwg.mxu0
        %v625 = vand.u32 %v317, 4294901760
        %626 = vmatpush.msra.mxu0 %v625
        %v627 = vand.u32 %v313, 4294901760
        %628 = vmatpush.msra.mxu0 %v627
        %v629 = vand.u32 %v309, 4294901760
        %630 = vmatpush.msra.mxu0 %v629
        %v631 = vand.u32 %v305, 4294901760
        %632 = vmatpush.msra.mxu0 %v631
        %v633 = vand.u32 %v301, 4294901760
        %634 = vmatpush.msra.mxu0 %v633
        %v635 = vand.u32 %v297, 4294901760
        %636 = vmatpush.msra.mxu0 %v635
        %v637 = vand.u32 %v293, 4294901760
        %638 = vmatpush.msra.mxu0 %v637
        %v639 = vand.u32 %v289, 4294901760
        %640 = vmatpush.msra.mxu0 %v639
        %v641 = vand.u32 %v285, 4294901760
        %642 = vmatpush.msra.mxu0 %v641
        %v643 = vand.u32 %v281, 4294901760
        %644 = vmatpush.msra.mxu0 %v643
        %v645 = vand.u32 %v277, 4294901760
        %646 = vmatpush.msra.mxu0 %v645
        %v647 = vand.u32 %v273, 4294901760
        %648 = vmatpush.msra.mxu0 %v647
        %v649 = vand.u32 %v269, 4294901760
        %650 = vmatpush.msra.mxu0 %v649
        %v651 = vand.u32 %v265, 4294901760
        %652 = vmatpush.msra.mxu0 %v651
        %v653 = vand.u32 %v261, 4294901760
        %654 = vmatpush.msra.mxu0 %v653
        %v655 = vand.u32 %v257, 4294901760
        %656 = vmatpush.msra.mxu0 %v655
        %v657 = vand.u32 %v256, 4294901760
        %658 = vmatmul.f32.gmra.mxu0 %v657
        %v659 = vpop.f32.mrf.mxu0
        %v660 = vadd.f32 %v623, %v659
        %661 = vdwg.mxu0
        %v662 = vand.u32 %v318, 4294901760
        %663 = vmatpush.msra.mxu0 %v662
        %v664 = vand.u32 %v314, 4294901760
        %665 = vmatpush.msra.mxu0 %v664
        %v666 = vand.u32 %v310, 4294901760
        %667 = vmatpush.msra.mxu0 %v666
        %v668 = vand.u32 %v306, 4294901760
        %669 = vmatpush.msra.mxu0 %v668
        %v670 = vand.u32 %v302, 4294901760
        %671 = vmatpush.msra.mxu0 %v670
        %v672 = vand.u32 %v298, 4294901760
        %673 = vmatpush.msra.mxu0 %v672
        %v674 = vand.u32 %v294, 4294901760
        %675 = vmatpush.msra.mxu0 %v674
        %v676 = vand.u32 %v290, 4294901760
        %677 = vmatpush.msra.mxu0 %v676
        %v678 = vand.u32 %v286, 4294901760
        %679 = vmatpush.msra.mxu0 %v678
        %v680 = vand.u32 %v282, 4294901760
        %681 = vmatpush.msra.mxu0 %v680
        %v682 = vand.u32 %v278, 4294901760
        %683 = vmatpush.msra.mxu0 %v682
        %v684 = vand.u32 %v274, 4294901760
        %685 = vmatpush.msra.mxu0 %v684
        %v686 = vand.u32 %v270, 4294901760
        %687 = vmatpush.msra.mxu0 %v686
        %v688 = vand.u32 %v266, 4294901760
        %689 = vmatpush.msra.mxu0 %v688
        %v690 = vand.u32 %v262, 4294901760
        %691 = vmatpush.msra.mxu0 %v690
        %v692 = vand.u32 %v258, 4294901760
        %693 = vmatpush.msra.mxu0 %v692
        %v694 = vand.u32 %v256, 4294901760
        %v695 = vsub.f32 %v256, %v694
        %v696 = vand.u32 %v695, 4294901760
        %v697 = vsub.f32 %v695, %v696
        %v698 = vand.u32 %v697, 4294901760
        %699 = vmatmul.f32.gmra.mxu0 %v698
        %v700 = vpop.f32.mrf.mxu0
        %v701 = vadd.f32 0.0, %v700
        %702 = vdwg.mxu0
        %v703 = vand.u32 %v318, 4294901760
        %v704 = vsub.f32 %v318, %v703
        %v705 = vand.u32 %v704, 4294901760
        %v706 = vsub.f32 %v704, %v705
        %v707 = vand.u32 %v706, 4294901760
        %708 = vmatpush.msra.mxu0 %v707
        %v709 = vand.u32 %v314, 4294901760
        %v710 = vsub.f32 %v314, %v709
        %v711 = vand.u32 %v710, 4294901760
        %v712 = vsub.f32 %v710, %v711
        %v713 = vand.u32 %v712, 4294901760
        %714 = vmatpush.msra.mxu0 %v713
        %v715 = vand.u32 %v310, 4294901760
        %v716 = vsub.f32 %v310, %v715
        %v717 = vand.u32 %v716, 4294901760
        %v718 = vsub.f32 %v716, %v717
        %v719 = vand.u32 %v718, 4294901760
        %720 = vmatpush.msra.mxu0 %v719
        %v721 = vand.u32 %v306, 4294901760
        %v722 = vsub.f32 %v306, %v721
        %v723 = vand.u32 %v722, 4294901760
        %v724 = vsub.f32 %v722, %v723
        %v725 = vand.u32 %v724, 4294901760
        %726 = vmatpush.msra.mxu0 %v725
        %v727 = vand.u32 %v302, 4294901760
        %v728 = vsub.f32 %v302, %v727
        %v729 = vand.u32 %v728, 4294901760
        %v730 = vsub.f32 %v728, %v729
        %v731 = vand.u32 %v730, 4294901760
        %732 = vmatpush.msra.mxu0 %v731
        %v733 = vand.u32 %v298, 4294901760
        %v734 = vsub.f32 %v298, %v733
        %v735 = vand.u32 %v734, 4294901760
        %v736 = vsub.f32 %v734, %v735
        %v737 = vand.u32 %v736, 4294901760
        %738 = vmatpush.msra.mxu0 %v737
        %v739 = vand.u32 %v294, 4294901760
        %v740 = vsub.f32 %v294, %v739
        %v741 = vand.u32 %v740, 4294901760
        %v742 = vsub.f32 %v740, %v741
        %v743 = vand.u32 %v742, 4294901760
        %744 = vmatpush.msra.mxu0 %v743
        %v745 = vand.u32 %v290, 4294901760
        %v746 = vsub.f32 %v290, %v745
        %v747 = vand.u32 %v746, 4294901760
        %v748 = vsub.f32 %v746, %v747
        %v749 = vand.u32 %v748, 4294901760
        %750 = vmatpush.msra.mxu0 %v749
        %v751 = vand.u32 %v286, 4294901760
        %v752 = vsub.f32 %v286, %v751
        %v753 = vand.u32 %v752, 4294901760
        %v754 = vsub.f32 %v752, %v753
        %v755 = vand.u32 %v754, 4294901760
        %756 = vmatpush.msra.mxu0 %v755
        %v757 = vand.u32 %v282, 4294901760
        %v758 = vsub.f32 %v282, %v757
        %v759 = vand.u32 %v758, 4294901760
        %v760 = vsub.f32 %v758, %v759
        %v761 = vand.u32 %v760, 4294901760
        %762 = vmatpush.msra.mxu0 %v761
        %v763 = vand.u32 %v278, 4294901760
        %v764 = vsub.f32 %v278, %v763
        %v765 = vand.u32 %v764, 4294901760
        %v766 = vsub.f32 %v764, %v765
        %v767 = vand.u32 %v766, 4294901760
        %768 = vmatpush.msra.mxu0 %v767
        %v769 = vand.u32 %v274, 4294901760
        %v770 = vsub.f32 %v274, %v769
        %v771 = vand.u32 %v770, 4294901760
        %v772 = vsub.f32 %v770, %v771
        %v773 = vand.u32 %v772, 4294901760
        %774 = vmatpush.msra.mxu0 %v773
        %v775 = vand.u32 %v270, 4294901760
        %v776 = vsub.f32 %v270, %v775
        %v777 = vand.u32 %v776, 4294901760
        %v778 = vsub.f32 %v776, %v777
        %v779 = vand.u32 %v778, 4294901760
        %780 = vmatpush.msra.mxu0 %v779
        %v781 = vand.u32 %v266, 4294901760
        %v782 = vsub.f32 %v266, %v781
        %v783 = vand.u32 %v782, 4294901760
        %v784 = vsub.f32 %v782, %v783
        %v785 = vand.u32 %v784, 4294901760
        %786 = vmatpush.msra.mxu0 %v785
        %v787 = vand.u32 %v262, 4294901760
        %v788 = vsub.f32 %v262, %v787
        %v789 = vand.u32 %v788, 4294901760
        %v790 = vsub.f32 %v788, %v789
        %v791 = vand.u32 %v790, 4294901760
        %792 = vmatpush.msra.mxu0 %v791
        %v793 = vand.u32 %v258, 4294901760
        %v794 = vsub.f32 %v258, %v793
        %v795 = vand.u32 %v794, 4294901760
        %v796 = vsub.f32 %v794, %v795
        %v797 = vand.u32 %v796, 4294901760
        %798 = vmatpush.msra.mxu0 %v797
        %v799 = vand.u32 %v256, 4294901760
        %800 = vmatmul.f32.gmra.mxu0 %v799
        %v801 = vpop.f32.mrf.mxu0
        %v802 = vadd.f32 %v701, %v801
        %803 = vdwg.mxu0
        %v804 = vand.u32 %v318, 4294901760
        %v805 = vsub.f32 %v318, %v804
        %806 = vmatpush.msra.mxu0 %v805
        %v807 = vand.u32 %v314, 4294901760
        %v808 = vsub.f32 %v314, %v807
        %809 = vmatpush.msra.mxu0 %v808
        %v810 = vand.u32 %v310, 4294901760
        %v811 = vsub.f32 %v310, %v810
        %812 = vmatpush.msra.mxu0 %v811
        %v813 = vand.u32 %v306, 4294901760
        %v814 = vsub.f32 %v306, %v813
        %815 = vmatpush.msra.mxu0 %v814
        %v816 = vand.u32 %v302, 4294901760
        %v817 = vsub.f32 %v302, %v816
        %818 = vmatpush.msra.mxu0 %v817
        %v819 = vand.u32 %v298, 4294901760
        %v820 = vsub.f32 %v298, %v819
        %821 = vmatpush.msra.mxu0 %v820
        %v822 = vand.u32 %v294, 4294901760
        %v823 = vsub.f32 %v294, %v822
        %824 = vmatpush.msra.mxu0 %v823
        %v825 = vand.u32 %v290, 4294901760
        %v826 = vsub.f32 %v290, %v825
        %827 = vmatpush.msra.mxu0 %v826
        %v828 = vand.u32 %v286, 4294901760
        %v829 = vsub.f32 %v286, %v828
        %830 = vmatpush.msra.mxu0 %v829
        %v831 = vand.u32 %v282, 4294901760
        %v832 = vsub.f32 %v282, %v831
        %833 = vmatpush.msra.mxu0 %v832
        %v834 = vand.u32 %v278, 4294901760
        %v835 = vsub.f32 %v278, %v834
        %836 = vmatpush.msra.mxu0 %v835
        %v837 = vand.u32 %v274, 4294901760
        %v838 = vsub.f32 %v274, %v837
        %839 = vmatpush.msra.mxu0 %v838
        %v840 = vand.u32 %v270, 4294901760
        %v841 = vsub.f32 %v270, %v840
        %842 = vmatpush.msra.mxu0 %v841
        %v843 = vand.u32 %v266, 4294901760
        %v844 = vsub.f32 %v266, %v843
        %845 = vmatpush.msra.mxu0 %v844
        %v846 = vand.u32 %v262, 4294901760
        %v847 = vsub.f32 %v262, %v846
        %848 = vmatpush.msra.mxu0 %v847
        %v849 = vand.u32 %v258, 4294901760
        %v850 = vsub.f32 %v258, %v849
        %851 = vmatpush.msra.mxu0 %v850
        %v852 = vand.u32 %v256, 4294901760
        %v853 = vsub.f32 %v256, %v852
        %854 = vmatmul.f32.gmra.mxu0 %v853
        %v855 = vpop.f32.mrf.mxu0
        %v856 = vadd.f32 %v802, %v855
        %857 = vdwg.mxu0
        %v858 = vand.u32 %v318, 4294901760
        %859 = vmatpush.msra.mxu0 %v858
        %v860 = vand.u32 %v314, 4294901760
        %861 = vmatpush.msra.mxu0 %v860
        %v862 = vand.u32 %v310, 4294901760
        %863 = vmatpush.msra.mxu0 %v862
        %v864 = vand.u32 %v306, 4294901760
        %865 = vmatpush.msra.mxu0 %v864
        %v866 = vand.u32 %v302, 4294901760
        %867 = vmatpush.msra.mxu0 %v866
        %v868 = vand.u32 %v298, 4294901760
        %869 = vmatpush.msra.mxu0 %v868
        %v870 = vand.u32 %v294, 4294901760
        %871 = vmatpush.msra.mxu0 %v870
        %v872 = vand.u32 %v290, 4294901760
        %873 = vmatpush.msra.mxu0 %v872
        %v874 = vand.u32 %v286, 4294901760
        %875 = vmatpush.msra.mxu0 %v874
        %v876 = vand.u32 %v282, 4294901760
        %877 = vmatpush.msra.mxu0 %v876
        %v878 = vand.u32 %v278, 4294901760
        %879 = vmatpush.msra.mxu0 %v878
        %v880 = vand.u32 %v274, 4294901760
        %881 = vmatpush.msra.mxu0 %v880
        %v882 = vand.u32 %v270, 4294901760
        %883 = vmatpush.msra.mxu0 %v882
        %v884 = vand.u32 %v266, 4294901760
        %885 = vmatpush.msra.mxu0 %v884
        %v886 = vand.u32 %v262, 4294901760
        %887 = vmatpush.msra.mxu0 %v886
        %v888 = vand.u32 %v258, 4294901760
        %889 = vmatpush.msra.mxu0 %v888
        %v890 = vand.u32 %v256, 4294901760
        %v891 = vsub.f32 %v256, %v890
        %v892 = vand.u32 %v891, 4294901760
        %893 = vmatmul.f32.gmra.mxu0 %v892
        %v894 = vpop.f32.mrf.mxu0
        %v895 = vadd.f32 %v856, %v894
        %896 = vdwg.mxu0
        %v897 = vand.u32 %v318, 4294901760
        %v898 = vsub.f32 %v318, %v897
        %v899 = vand.u32 %v898, 4294901760
        %900 = vmatpush.msra.mxu0 %v899
        %v901 = vand.u32 %v314, 4294901760
        %v902 = vsub.f32 %v314, %v901
        %v903 = vand.u32 %v902, 4294901760
        %904 = vmatpush.msra.mxu0 %v903
        %v905 = vand.u32 %v310, 4294901760
        %v906 = vsub.f32 %v310, %v905
        %v907 = vand.u32 %v906, 4294901760
        %908 = vmatpush.msra.mxu0 %v907
        %v909 = vand.u32 %v306, 4294901760
        %v910 = vsub.f32 %v306, %v909
        %v911 = vand.u32 %v910, 4294901760
        %912 = vmatpush.msra.mxu0 %v911
        %v913 = vand.u32 %v302, 4294901760
        %v914 = vsub.f32 %v302, %v913
        %v915 = vand.u32 %v914, 4294901760
        %916 = vmatpush.msra.mxu0 %v915
        %v917 = vand.u32 %v298, 4294901760
        %v918 = vsub.f32 %v298, %v917
        %v919 = vand.u32 %v918, 4294901760
        %920 = vmatpush.msra.mxu0 %v919
        %v921 = vand.u32 %v294, 4294901760
        %v922 = vsub.f32 %v294, %v921
        %v923 = vand.u32 %v922, 4294901760
        %924 = vmatpush.msra.mxu0 %v923
        %v925 = vand.u32 %v290, 4294901760
        %v926 = vsub.f32 %v290, %v925
        %v927 = vand.u32 %v926, 4294901760
        %928 = vmatpush.msra.mxu0 %v927
        %v929 = vand.u32 %v286, 4294901760
        %v930 = vsub.f32 %v286, %v929
        %v931 = vand.u32 %v930, 4294901760
        %932 = vmatpush.msra.mxu0 %v931
        %v933 = vand.u32 %v282, 4294901760
        %v934 = vsub.f32 %v282, %v933
        %v935 = vand.u32 %v934, 4294901760
        %936 = vmatpush.msra.mxu0 %v935
        %v937 = vand.u32 %v278, 4294901760
        %v938 = vsub.f32 %v278, %v937
        %v939 = vand.u32 %v938, 4294901760
        %940 = vmatpush.msra.mxu0 %v939
        %v941 = vand.u32 %v274, 4294901760
        %v942 = vsub.f32 %v274, %v941
        %v943 = vand.u32 %v942, 4294901760
        %944 = vmatpush.msra.mxu0 %v943
        %v945 = vand.u32 %v270, 4294901760
        %v946 = vsub.f32 %v270, %v945
        %v947 = vand.u32 %v946, 4294901760
        %948 = vmatpush.msra.mxu0 %v947
        %v949 = vand.u32 %v266, 4294901760
        %v950 = vsub.f32 %v266, %v949
        %v951 = vand.u32 %v950, 4294901760
        %952 = vmatpush.msra.mxu0 %v951
        %v953 = vand.u32 %v262, 4294901760
        %v954 = vsub.f32 %v262, %v953
        %v955 = vand.u32 %v954, 4294901760
        %956 = vmatpush.msra.mxu0 %v955
        %v957 = vand.u32 %v258, 4294901760
        %v958 = vsub.f32 %v258, %v957
        %v959 = vand.u32 %v958, 4294901760
        %960 = vmatpush.msra.mxu0 %v959
        %v961 = vand.u32 %v256, 4294901760
        %962 = vmatmul.f32.gmra.mxu0 %v961
        %v963 = vpop.f32.mrf.mxu0
        %v964 = vadd.f32 %v895, %v963
        %965 = vdwg.mxu0
        %v966 = vand.u32 %v318, 4294901760
        %967 = vmatpush.msra.mxu0 %v966
        %v968 = vand.u32 %v314, 4294901760
        %969 = vmatpush.msra.mxu0 %v968
        %v970 = vand.u32 %v310, 4294901760
        %971 = vmatpush.msra.mxu0 %v970
        %v972 = vand.u32 %v306, 4294901760
        %973 = vmatpush.msra.mxu0 %v972
        %v974 = vand.u32 %v302, 4294901760
        %975 = vmatpush.msra.mxu0 %v974
        %v976 = vand.u32 %v298, 4294901760
        %977 = vmatpush.msra.mxu0 %v976
        %v978 = vand.u32 %v294, 4294901760
        %979 = vmatpush.msra.mxu0 %v978
        %v980 = vand.u32 %v290, 4294901760
        %981 = vmatpush.msra.mxu0 %v980
        %v982 = vand.u32 %v286, 4294901760
        %983 = vmatpush.msra.mxu0 %v982
        %v984 = vand.u32 %v282, 4294901760
        %985 = vmatpush.msra.mxu0 %v984
        %v986 = vand.u32 %v278, 4294901760
        %987 = vmatpush.msra.mxu0 %v986
        %v988 = vand.u32 %v274, 4294901760
        %989 = vmatpush.msra.mxu0 %v988
        %v990 = vand.u32 %v270, 4294901760
        %991 = vmatpush.msra.mxu0 %v990
        %v992 = vand.u32 %v266, 4294901760
        %993 = vmatpush.msra.mxu0 %v992
        %v994 = vand.u32 %v262, 4294901760
        %995 = vmatpush.msra.mxu0 %v994
        %v996 = vand.u32 %v258, 4294901760
        %997 = vmatpush.msra.mxu0 %v996
        %v998 = vand.u32 %v256, 4294901760
        %999 = vmatmul.f32.gmra.mxu0 %v998
        %v1000 = vpop.f32.mrf.mxu0
        %v1001 = vadd.f32 %v964, %v1000
        %1002 = vdwg.mxu0
        %v1003 = vand.u32 %v319, 4294901760
        %1004 = vmatpush.msra.mxu0 %v1003
        %v1005 = vand.u32 %v315, 4294901760
        %1006 = vmatpush.msra.mxu0 %v1005
        %v1007 = vand.u32 %v311, 4294901760
        %1008 = vmatpush.msra.mxu0 %v1007
        %v1009 = vand.u32 %v307, 4294901760
        %1010 = vmatpush.msra.mxu0 %v1009
        %v1011 = vand.u32 %v303, 4294901760
        %1012 = vmatpush.msra.mxu0 %v1011
        %v1013 = vand.u32 %v299, 4294901760
        %1014 = vmatpush.msra.mxu0 %v1013
        %v1015 = vand.u32 %v295, 4294901760
        %1016 = vmatpush.msra.mxu0 %v1015
        %v1017 = vand.u32 %v291, 4294901760
        %1018 = vmatpush.msra.mxu0 %v1017
        %v1019 = vand.u32 %v287, 4294901760
        %1020 = vmatpush.msra.mxu0 %v1019
        %v1021 = vand.u32 %v283, 4294901760
        %1022 = vmatpush.msra.mxu0 %v1021
        %v1023 = vand.u32 %v279, 4294901760
        %1024 = vmatpush.msra.mxu0 %v1023
        %v1025 = vand.u32 %v275, 4294901760
        %1026 = vmatpush.msra.mxu0 %v1025
        %v1027 = vand.u32 %v271, 4294901760
        %1028 = vmatpush.msra.mxu0 %v1027
        %v1029 = vand.u32 %v267, 4294901760
        %1030 = vmatpush.msra.mxu0 %v1029
        %v1031 = vand.u32 %v263, 4294901760
        %1032 = vmatpush.msra.mxu0 %v1031
        %v1033 = vand.u32 %v259, 4294901760
        %1034 = vmatpush.msra.mxu0 %v1033
        %v1035 = vand.u32 %v256, 4294901760
        %v1036 = vsub.f32 %v256, %v1035
        %v1037 = vand.u32 %v1036, 4294901760
        %v1038 = vsub.f32 %v1036, %v1037
        %v1039 = vand.u32 %v1038, 4294901760
        %1040 = vmatmul.f32.gmra.mxu0 %v1039
        %v1041 = vpop.f32.mrf.mxu0
        %v1042 = vadd.f32 0.0, %v1041
        %1043 = vdwg.mxu0
        %v1044 = vand.u32 %v319, 4294901760
        %v1045 = vsub.f32 %v319, %v1044
        %v1046 = vand.u32 %v1045, 4294901760
        %v1047 = vsub.f32 %v1045, %v1046
        %v1048 = vand.u32 %v1047, 4294901760
        %1049 = vmatpush.msra.mxu0 %v1048
        %v1050 = vand.u32 %v315, 4294901760
        %v1051 = vsub.f32 %v315, %v1050
        %v1052 = vand.u32 %v1051, 4294901760
        %v1053 = vsub.f32 %v1051, %v1052
        %v1054 = vand.u32 %v1053, 4294901760
        %1055 = vmatpush.msra.mxu0 %v1054
        %v1056 = vand.u32 %v311, 4294901760
        %v1057 = vsub.f32 %v311, %v1056
        %v1058 = vand.u32 %v1057, 4294901760
        %v1059 = vsub.f32 %v1057, %v1058
        %v1060 = vand.u32 %v1059, 4294901760
        %1061 = vmatpush.msra.mxu0 %v1060
        %v1062 = vand.u32 %v307, 4294901760
        %v1063 = vsub.f32 %v307, %v1062
        %v1064 = vand.u32 %v1063, 4294901760
        %v1065 = vsub.f32 %v1063, %v1064
        %v1066 = vand.u32 %v1065, 4294901760
        %1067 = vmatpush.msra.mxu0 %v1066
        %v1068 = vand.u32 %v303, 4294901760
        %v1069 = vsub.f32 %v303, %v1068
        %v1070 = vand.u32 %v1069, 4294901760
        %v1071 = vsub.f32 %v1069, %v1070
        %v1072 = vand.u32 %v1071, 4294901760
        %1073 = vmatpush.msra.mxu0 %v1072
        %v1074 = vand.u32 %v299, 4294901760
        %v1075 = vsub.f32 %v299, %v1074
        %v1076 = vand.u32 %v1075, 4294901760
        %v1077 = vsub.f32 %v1075, %v1076
        %v1078 = vand.u32 %v1077, 4294901760
        %1079 = vmatpush.msra.mxu0 %v1078
        %v1080 = vand.u32 %v295, 4294901760
        %v1081 = vsub.f32 %v295, %v1080
        %v1082 = vand.u32 %v1081, 4294901760
        %v1083 = vsub.f32 %v1081, %v1082
        %v1084 = vand.u32 %v1083, 4294901760
        %1085 = vmatpush.msra.mxu0 %v1084
        %v1086 = vand.u32 %v291, 4294901760
        %v1087 = vsub.f32 %v291, %v1086
        %v1088 = vand.u32 %v1087, 4294901760
        %v1089 = vsub.f32 %v1087, %v1088
        %v1090 = vand.u32 %v1089, 4294901760
        %1091 = vmatpush.msra.mxu0 %v1090
        %v1092 = vand.u32 %v287, 4294901760
        %v1093 = vsub.f32 %v287, %v1092
        %v1094 = vand.u32 %v1093, 4294901760
        %v1095 = vsub.f32 %v1093, %v1094
        %v1096 = vand.u32 %v1095, 4294901760
        %1097 = vmatpush.msra.mxu0 %v1096
        %v1098 = vand.u32 %v283, 4294901760
        %v1099 = vsub.f32 %v283, %v1098
        %v1100 = vand.u32 %v1099, 4294901760
        %v1101 = vsub.f32 %v1099, %v1100
        %v1102 = vand.u32 %v1101, 4294901760
        %1103 = vmatpush.msra.mxu0 %v1102
        %v1104 = vand.u32 %v279, 4294901760
        %v1105 = vsub.f32 %v279, %v1104
        %v1106 = vand.u32 %v1105, 4294901760
        %v1107 = vsub.f32 %v1105, %v1106
        %v1108 = vand.u32 %v1107, 4294901760
        %1109 = vmatpush.msra.mxu0 %v1108
        %v1110 = vand.u32 %v275, 4294901760
        %v1111 = vsub.f32 %v275, %v1110
        %v1112 = vand.u32 %v1111, 4294901760
        %v1113 = vsub.f32 %v1111, %v1112
        %v1114 = vand.u32 %v1113, 4294901760
        %1115 = vmatpush.msra.mxu0 %v1114
        %v1116 = vand.u32 %v271, 4294901760
        %v1117 = vsub.f32 %v271, %v1116
        %v1118 = vand.u32 %v1117, 4294901760
        %v1119 = vsub.f32 %v1117, %v1118
        %v1120 = vand.u32 %v1119, 4294901760
        %1121 = vmatpush.msra.mxu0 %v1120
        %v1122 = vand.u32 %v267, 4294901760
        %v1123 = vsub.f32 %v267, %v1122
        %v1124 = vand.u32 %v1123, 4294901760
        %v1125 = vsub.f32 %v1123, %v1124
        %v1126 = vand.u32 %v1125, 4294901760
        %1127 = vmatpush.msra.mxu0 %v1126
        %v1128 = vand.u32 %v263, 4294901760
        %v1129 = vsub.f32 %v263, %v1128
        %v1130 = vand.u32 %v1129, 4294901760
        %v1131 = vsub.f32 %v1129, %v1130
        %v1132 = vand.u32 %v1131, 4294901760
        %1133 = vmatpush.msra.mxu0 %v1132
        %v1134 = vand.u32 %v259, 4294901760
        %v1135 = vsub.f32 %v259, %v1134
        %v1136 = vand.u32 %v1135, 4294901760
        %v1137 = vsub.f32 %v1135, %v1136
        %v1138 = vand.u32 %v1137, 4294901760
        %1139 = vmatpush.msra.mxu0 %v1138
        %v1140 = vand.u32 %v256, 4294901760
        %1141 = vmatmul.f32.gmra.mxu0 %v1140
        %v1142 = vpop.f32.mrf.mxu0
        %v1143 = vadd.f32 %v1042, %v1142
        %1144 = vdwg.mxu0
        %v1145 = vand.u32 %v319, 4294901760
        %v1146 = vsub.f32 %v319, %v1145
        %1147 = vmatpush.msra.mxu0 %v1146
        %v1148 = vand.u32 %v315, 4294901760
        %v1149 = vsub.f32 %v315, %v1148
        %1150 = vmatpush.msra.mxu0 %v1149
        %v1151 = vand.u32 %v311, 4294901760
        %v1152 = vsub.f32 %v311, %v1151
        %1153 = vmatpush.msra.mxu0 %v1152
        %v1154 = vand.u32 %v307, 4294901760
        %v1155 = vsub.f32 %v307, %v1154
        %1156 = vmatpush.msra.mxu0 %v1155
        %v1157 = vand.u32 %v303, 4294901760
        %v1158 = vsub.f32 %v303, %v1157
        %1159 = vmatpush.msra.mxu0 %v1158
        %v1160 = vand.u32 %v299, 4294901760
        %v1161 = vsub.f32 %v299, %v1160
        %1162 = vmatpush.msra.mxu0 %v1161
        %v1163 = vand.u32 %v295, 4294901760
        %v1164 = vsub.f32 %v295, %v1163
        %1165 = vmatpush.msra.mxu0 %v1164
        %v1166 = vand.u32 %v291, 4294901760
        %v1167 = vsub.f32 %v291, %v1166
        %1168 = vmatpush.msra.mxu0 %v1167
        %v1169 = vand.u32 %v287, 4294901760
        %v1170 = vsub.f32 %v287, %v1169
        %1171 = vmatpush.msra.mxu0 %v1170
        %v1172 = vand.u32 %v283, 4294901760
        %v1173 = vsub.f32 %v283, %v1172
        %1174 = vmatpush.msra.mxu0 %v1173
        %v1175 = vand.u32 %v279, 4294901760
        %v1176 = vsub.f32 %v279, %v1175
        %1177 = vmatpush.msra.mxu0 %v1176
        %v1178 = vand.u32 %v275, 4294901760
        %v1179 = vsub.f32 %v275, %v1178
        %1180 = vmatpush.msra.mxu0 %v1179
        %v1181 = vand.u32 %v271, 4294901760
        %v1182 = vsub.f32 %v271, %v1181
        %1183 = vmatpush.msra.mxu0 %v1182
        %v1184 = vand.u32 %v267, 4294901760
        %v1185 = vsub.f32 %v267, %v1184
        %1186 = vmatpush.msra.mxu0 %v1185
        %v1187 = vand.u32 %v263, 4294901760
        %v1188 = vsub.f32 %v263, %v1187
        %1189 = vmatpush.msra.mxu0 %v1188
        %v1190 = vand.u32 %v259, 4294901760
        %v1191 = vsub.f32 %v259, %v1190
        %1192 = vmatpush.msra.mxu0 %v1191
        %v1193 = vand.u32 %v256, 4294901760
        %v1194 = vsub.f32 %v256, %v1193
        %1195 = vmatmul.f32.gmra.mxu0 %v1194
        %v1196 = vpop.f32.mrf.mxu0
        %v1197 = vadd.f32 %v1143, %v1196
        %1198 = vdwg.mxu0
        %v1199 = vand.u32 %v319, 4294901760
        %1200 = vmatpush.msra.mxu0 %v1199
        %v1201 = vand.u32 %v315, 4294901760
        %1202 = vmatpush.msra.mxu0 %v1201
        %v1203 = vand.u32 %v311, 4294901760
        %1204 = vmatpush.msra.mxu0 %v1203
        %v1205 = vand.u32 %v307, 4294901760
        %1206 = vmatpush.msra.mxu0 %v1205
        %v1207 = vand.u32 %v303, 4294901760
        %1208 = vmatpush.msra.mxu0 %v1207
        %v1209 = vand.u32 %v299, 4294901760
        %1210 = vmatpush.msra.mxu0 %v1209
        %v1211 = vand.u32 %v295, 4294901760
        %1212 = vmatpush.msra.mxu0 %v1211
        %v1213 = vand.u32 %v291, 4294901760
        %1214 = vmatpush.msra.mxu0 %v1213
        %v1215 = vand.u32 %v287, 4294901760
        %1216 = vmatpush.msra.mxu0 %v1215
        %v1217 = vand.u32 %v283, 4294901760
        %1218 = vmatpush.msra.mxu0 %v1217
        %v1219 = vand.u32 %v279, 4294901760
        %1220 = vmatpush.msra.mxu0 %v1219
        %v1221 = vand.u32 %v275, 4294901760
        %1222 = vmatpush.msra.mxu0 %v1221
        %v1223 = vand.u32 %v271, 4294901760
        %1224 = vmatpush.msra.mxu0 %v1223
        %v1225 = vand.u32 %v267, 4294901760
        %1226 = vmatpush.msra.mxu0 %v1225
        %v1227 = vand.u32 %v263, 4294901760
        %1228 = vmatpush.msra.mxu0 %v1227
        %v1229 = vand.u32 %v259, 4294901760
        %1230 = vmatpush.msra.mxu0 %v1229
        %v1231 = vand.u32 %v256, 4294901760
        %v1232 = vsub.f32 %v256, %v1231
        %v1233 = vand.u32 %v1232, 4294901760
        %1234 = vmatmul.f32.gmra.mxu0 %v1233
        %v1235 = vpop.f32.mrf.mxu0
        %v1236 = vadd.f32 %v1197, %v1235
        %1237 = vdwg.mxu0
        %v1238 = vand.u32 %v319, 4294901760
        %v1239 = vsub.f32 %v319, %v1238
        %v1240 = vand.u32 %v1239, 4294901760
        %1241 = vmatpush.msra.mxu0 %v1240
        %v1242 = vand.u32 %v315, 4294901760
        %v1243 = vsub.f32 %v315, %v1242
        %v1244 = vand.u32 %v1243, 4294901760
        %1245 = vmatpush.msra.mxu0 %v1244
        %v1246 = vand.u32 %v311, 4294901760
        %v1247 = vsub.f32 %v311, %v1246
        %v1248 = vand.u32 %v1247, 4294901760
        %1249 = vmatpush.msra.mxu0 %v1248
        %v1250 = vand.u32 %v307, 4294901760
        %v1251 = vsub.f32 %v307, %v1250
        %v1252 = vand.u32 %v1251, 4294901760
        %1253 = vmatpush.msra.mxu0 %v1252
        %v1254 = vand.u32 %v303, 4294901760
        %v1255 = vsub.f32 %v303, %v1254
        %v1256 = vand.u32 %v1255, 4294901760
        %1257 = vmatpush.msra.mxu0 %v1256
        %v1258 = vand.u32 %v299, 4294901760
        %v1259 = vsub.f32 %v299, %v1258
        %v1260 = vand.u32 %v1259, 4294901760
        %1261 = vmatpush.msra.mxu0 %v1260
        %v1262 = vand.u32 %v295, 4294901760
        %v1263 = vsub.f32 %v295, %v1262
        %v1264 = vand.u32 %v1263, 4294901760
        %1265 = vmatpush.msra.mxu0 %v1264
        %v1266 = vand.u32 %v291, 4294901760
        %v1267 = vsub.f32 %v291, %v1266
        %v1268 = vand.u32 %v1267, 4294901760
        %1269 = vmatpush.msra.mxu0 %v1268
        %v1270 = vand.u32 %v287, 4294901760
        %v1271 = vsub.f32 %v287, %v1270
        %v1272 = vand.u32 %v1271, 4294901760
        %1273 = vmatpush.msra.mxu0 %v1272
        %v1274 = vand.u32 %v283, 4294901760
        %v1275 = vsub.f32 %v283, %v1274
        %v1276 = vand.u32 %v1275, 4294901760
        %1277 = vmatpush.msra.mxu0 %v1276
        %v1278 = vand.u32 %v279, 4294901760
        %v1279 = vsub.f32 %v279, %v1278
        %v1280 = vand.u32 %v1279, 4294901760
        %1281 = vmatpush.msra.mxu0 %v1280
        %v1282 = vand.u32 %v275, 4294901760
        %v1283 = vsub.f32 %v275, %v1282
        %v1284 = vand.u32 %v1283, 4294901760
        %1285 = vmatpush.msra.mxu0 %v1284
        %v1286 = vand.u32 %v271, 4294901760
        %v1287 = vsub.f32 %v271, %v1286
        %v1288 = vand.u32 %v1287, 4294901760
        %1289 = vmatpush.msra.mxu0 %v1288
        %v1290 = vand.u32 %v267, 4294901760
        %v1291 = vsub.f32 %v267, %v1290
        %v1292 = vand.u32 %v1291, 4294901760
        %1293 = vmatpush.msra.mxu0 %v1292
        %v1294 = vand.u32 %v263, 4294901760
        %v1295 = vsub.f32 %v263, %v1294
        %v1296 = vand.u32 %v1295, 4294901760
        %1297 = vmatpush.msra.mxu0 %v1296
        %v1298 = vand.u32 %v259, 4294901760
        %v1299 = vsub.f32 %v259, %v1298
        %v1300 = vand.u32 %v1299, 4294901760
        %1301 = vmatpush.msra.mxu0 %v1300
        %v1302 = vand.u32 %v256, 4294901760
        %1303 = vmatmul.f32.gmra.mxu0 %v1302
        %v1304 = vpop.f32.mrf.mxu0
        %v1305 = vadd.f32 %v1236, %v1304
        %1306 = vdwg.mxu0
        %v1307 = vand.u32 %v319, 4294901760
        %1308 = vmatpush.msra.mxu0 %v1307
        %v1309 = vand.u32 %v315, 4294901760
        %1310 = vmatpush.msra.mxu0 %v1309
        %v1311 = vand.u32 %v311, 4294901760
        %1312 = vmatpush.msra.mxu0 %v1311
        %v1313 = vand.u32 %v307, 4294901760
        %1314 = vmatpush.msra.mxu0 %v1313
        %v1315 = vand.u32 %v303, 4294901760
        %1316 = vmatpush.msra.mxu0 %v1315
        %v1317 = vand.u32 %v299, 4294901760
        %1318 = vmatpush.msra.mxu0 %v1317
        %v1319 = vand.u32 %v295, 4294901760
        %1320 = vmatpush.msra.mxu0 %v1319
        %v1321 = vand.u32 %v291, 4294901760
        %1322 = vmatpush.msra.mxu0 %v1321
        %v1323 = vand.u32 %v287, 4294901760
        %1324 = vmatpush.msra.mxu0 %v1323
        %v1325 = vand.u32 %v283, 4294901760
        %1326 = vmatpush.msra.mxu0 %v1325
        %v1327 = vand.u32 %v279, 4294901760
        %1328 = vmatpush.msra.mxu0 %v1327
        %v1329 = vand.u32 %v275, 4294901760
        %1330 = vmatpush.msra.mxu0 %v1329
        %v1331 = vand.u32 %v271, 4294901760
        %1332 = vmatpush.msra.mxu0 %v1331
        %v1333 = vand.u32 %v267, 4294901760
        %1334 = vmatpush.msra.mxu0 %v1333
        %v1335 = vand.u32 %v263, 4294901760
        %1336 = vmatpush.msra.mxu0 %v1335
        %v1337 = vand.u32 %v259, 4294901760
        %1338 = vmatpush.msra.mxu0 %v1337
        %v1339 = vand.u32 %v256, 4294901760
        %1340 = vmatmul.f32.gmra.mxu0 %v1339
        %v1341 = vpop.f32.mrf.mxu0
        %v1342 = vadd.f32 %v1305, %v1341
        %1343 = vdwg.mxu0
        %v1344 = vand.u32 %v320, 4294901760
        %1345 = vmatpush.msra.mxu0 %v1344
        %v1346 = vand.u32 %v316, 4294901760
        %1347 = vmatpush.msra.mxu0 %v1346
        %v1348 = vand.u32 %v312, 4294901760
        %1349 = vmatpush.msra.mxu0 %v1348
        %v1350 = vand.u32 %v308, 4294901760
        %1351 = vmatpush.msra.mxu0 %v1350
        %v1352 = vand.u32 %v304, 4294901760
        %1353 = vmatpush.msra.mxu0 %v1352
        %v1354 = vand.u32 %v300, 4294901760
        %1355 = vmatpush.msra.mxu0 %v1354
        %v1356 = vand.u32 %v296, 4294901760
        %1357 = vmatpush.msra.mxu0 %v1356
        %v1358 = vand.u32 %v292, 4294901760
        %1359 = vmatpush.msra.mxu0 %v1358
        %v1360 = vand.u32 %v288, 4294901760
        %1361 = vmatpush.msra.mxu0 %v1360
        %v1362 = vand.u32 %v284, 4294901760
        %1363 = vmatpush.msra.mxu0 %v1362
        %v1364 = vand.u32 %v280, 4294901760
        %1365 = vmatpush.msra.mxu0 %v1364
        %v1366 = vand.u32 %v276, 4294901760
        %1367 = vmatpush.msra.mxu0 %v1366
        %v1368 = vand.u32 %v272, 4294901760
        %1369 = vmatpush.msra.mxu0 %v1368
        %v1370 = vand.u32 %v268, 4294901760
        %1371 = vmatpush.msra.mxu0 %v1370
        %v1372 = vand.u32 %v264, 4294901760
        %1373 = vmatpush.msra.mxu0 %v1372
        %v1374 = vand.u32 %v260, 4294901760
        %1375 = vmatpush.msra.mxu0 %v1374
        %v1376 = vand.u32 %v256, 4294901760
        %v1377 = vsub.f32 %v256, %v1376
        %v1378 = vand.u32 %v1377, 4294901760
        %v1379 = vsub.f32 %v1377, %v1378
        %v1380 = vand.u32 %v1379, 4294901760
        %1381 = vmatmul.f32.gmra.mxu0 %v1380
        %v1382 = vpop.f32.mrf.mxu0
        %v1383 = vadd.f32 0.0, %v1382
        %1384 = vdwg.mxu0
        %v1385 = vand.u32 %v320, 4294901760
        %v1386 = vsub.f32 %v320, %v1385
        %v1387 = vand.u32 %v1386, 4294901760
        %v1388 = vsub.f32 %v1386, %v1387
        %v1389 = vand.u32 %v1388, 4294901760
        %1390 = vmatpush.msra.mxu0 %v1389
        %v1391 = vand.u32 %v316, 4294901760
        %v1392 = vsub.f32 %v316, %v1391
        %v1393 = vand.u32 %v1392, 4294901760
        %v1394 = vsub.f32 %v1392, %v1393
        %v1395 = vand.u32 %v1394, 4294901760
        %1396 = vmatpush.msra.mxu0 %v1395
        %v1397 = vand.u32 %v312, 4294901760
        %v1398 = vsub.f32 %v312, %v1397
        %v1399 = vand.u32 %v1398, 4294901760
        %v1400 = vsub.f32 %v1398, %v1399
        %v1401 = vand.u32 %v1400, 4294901760
        %1402 = vmatpush.msra.mxu0 %v1401
        %v1403 = vand.u32 %v308, 4294901760
        %v1404 = vsub.f32 %v308, %v1403
        %v1405 = vand.u32 %v1404, 4294901760
        %v1406 = vsub.f32 %v1404, %v1405
        %v1407 = vand.u32 %v1406, 4294901760
        %1408 = vmatpush.msra.mxu0 %v1407
        %v1409 = vand.u32 %v304, 4294901760
        %v1410 = vsub.f32 %v304, %v1409
        %v1411 = vand.u32 %v1410, 4294901760
        %v1412 = vsub.f32 %v1410, %v1411
        %v1413 = vand.u32 %v1412, 4294901760
        %1414 = vmatpush.msra.mxu0 %v1413
        %v1415 = vand.u32 %v300, 4294901760
        %v1416 = vsub.f32 %v300, %v1415
        %v1417 = vand.u32 %v1416, 4294901760
        %v1418 = vsub.f32 %v1416, %v1417
        %v1419 = vand.u32 %v1418, 4294901760
        %1420 = vmatpush.msra.mxu0 %v1419
        %v1421 = vand.u32 %v296, 4294901760
        %v1422 = vsub.f32 %v296, %v1421
        %v1423 = vand.u32 %v1422, 4294901760
        %v1424 = vsub.f32 %v1422, %v1423
        %v1425 = vand.u32 %v1424, 4294901760
        %1426 = vmatpush.msra.mxu0 %v1425
        %v1427 = vand.u32 %v292, 4294901760
        %v1428 = vsub.f32 %v292, %v1427
        %v1429 = vand.u32 %v1428, 4294901760
        %v1430 = vsub.f32 %v1428, %v1429
        %v1431 = vand.u32 %v1430, 4294901760
        %1432 = vmatpush.msra.mxu0 %v1431
        %v1433 = vand.u32 %v288, 4294901760
        %v1434 = vsub.f32 %v288, %v1433
        %v1435 = vand.u32 %v1434, 4294901760
        %v1436 = vsub.f32 %v1434, %v1435
        %v1437 = vand.u32 %v1436, 4294901760
        %1438 = vmatpush.msra.mxu0 %v1437
        %v1439 = vand.u32 %v284, 4294901760
        %v1440 = vsub.f32 %v284, %v1439
        %v1441 = vand.u32 %v1440, 4294901760
        %v1442 = vsub.f32 %v1440, %v1441
        %v1443 = vand.u32 %v1442, 4294901760
        %1444 = vmatpush.msra.mxu0 %v1443
        %v1445 = vand.u32 %v280, 4294901760
        %v1446 = vsub.f32 %v280, %v1445
        %v1447 = vand.u32 %v1446, 4294901760
        %v1448 = vsub.f32 %v1446, %v1447
        %v1449 = vand.u32 %v1448, 4294901760
        %1450 = vmatpush.msra.mxu0 %v1449
        %v1451 = vand.u32 %v276, 4294901760
        %v1452 = vsub.f32 %v276, %v1451
        %v1453 = vand.u32 %v1452, 4294901760
        %v1454 = vsub.f32 %v1452, %v1453
        %v1455 = vand.u32 %v1454, 4294901760
        %1456 = vmatpush.msra.mxu0 %v1455
        %v1457 = vand.u32 %v272, 4294901760
        %v1458 = vsub.f32 %v272, %v1457
        %v1459 = vand.u32 %v1458, 4294901760
        %v1460 = vsub.f32 %v1458, %v1459
        %v1461 = vand.u32 %v1460, 4294901760
        %1462 = vmatpush.msra.mxu0 %v1461
        %v1463 = vand.u32 %v268, 4294901760
        %v1464 = vsub.f32 %v268, %v1463
        %v1465 = vand.u32 %v1464, 4294901760
        %v1466 = vsub.f32 %v1464, %v1465
        %v1467 = vand.u32 %v1466, 4294901760
        %1468 = vmatpush.msra.mxu0 %v1467
        %v1469 = vand.u32 %v264, 4294901760
        %v1470 = vsub.f32 %v264, %v1469
        %v1471 = vand.u32 %v1470, 4294901760
        %v1472 = vsub.f32 %v1470, %v1471
        %v1473 = vand.u32 %v1472, 4294901760
        %1474 = vmatpush.msra.mxu0 %v1473
        %v1475 = vand.u32 %v260, 4294901760
        %v1476 = vsub.f32 %v260, %v1475
        %v1477 = vand.u32 %v1476, 4294901760
        %v1478 = vsub.f32 %v1476, %v1477
        %v1479 = vand.u32 %v1478, 4294901760
        %1480 = vmatpush.msra.mxu0 %v1479
        %v1481 = vand.u32 %v256, 4294901760
        %1482 = vmatmul.f32.gmra.mxu0 %v1481
        %v1483 = vpop.f32.mrf.mxu0
        %v1484 = vadd.f32 %v1383, %v1483
        %1485 = vdwg.mxu0
        %v1486 = vand.u32 %v320, 4294901760
        %v1487 = vsub.f32 %v320, %v1486
        %1488 = vmatpush.msra.mxu0 %v1487
        %v1489 = vand.u32 %v316, 4294901760
        %v1490 = vsub.f32 %v316, %v1489
        %1491 = vmatpush.msra.mxu0 %v1490
        %v1492 = vand.u32 %v312, 4294901760
        %v1493 = vsub.f32 %v312, %v1492
        %1494 = vmatpush.msra.mxu0 %v1493
        %v1495 = vand.u32 %v308, 4294901760
        %v1496 = vsub.f32 %v308, %v1495
        %1497 = vmatpush.msra.mxu0 %v1496
        %v1498 = vand.u32 %v304, 4294901760
        %v1499 = vsub.f32 %v304, %v1498
        %1500 = vmatpush.msra.mxu0 %v1499
        %v1501 = vand.u32 %v300, 4294901760
        %v1502 = vsub.f32 %v300, %v1501
        %1503 = vmatpush.msra.mxu0 %v1502
        %v1504 = vand.u32 %v296, 4294901760
        %v1505 = vsub.f32 %v296, %v1504
        %1506 = vmatpush.msra.mxu0 %v1505
        %v1507 = vand.u32 %v292, 4294901760
        %v1508 = vsub.f32 %v292, %v1507
        %1509 = vmatpush.msra.mxu0 %v1508
        %v1510 = vand.u32 %v288, 4294901760
        %v1511 = vsub.f32 %v288, %v1510
        %1512 = vmatpush.msra.mxu0 %v1511
        %v1513 = vand.u32 %v284, 4294901760
        %v1514 = vsub.f32 %v284, %v1513
        %1515 = vmatpush.msra.mxu0 %v1514
        %v1516 = vand.u32 %v280, 4294901760
        %v1517 = vsub.f32 %v280, %v1516
        %1518 = vmatpush.msra.mxu0 %v1517
        %v1519 = vand.u32 %v276, 4294901760
        %v1520 = vsub.f32 %v276, %v1519
        %1521 = vmatpush.msra.mxu0 %v1520
        %v1522 = vand.u32 %v272, 4294901760
        %v1523 = vsub.f32 %v272, %v1522
        %1524 = vmatpush.msra.mxu0 %v1523
        %v1525 = vand.u32 %v268, 4294901760
        %v1526 = vsub.f32 %v268, %v1525
        %1527 = vmatpush.msra.mxu0 %v1526
        %v1528 = vand.u32 %v264, 4294901760
        %v1529 = vsub.f32 %v264, %v1528
        %1530 = vmatpush.msra.mxu0 %v1529
        %v1531 = vand.u32 %v260, 4294901760
        %v1532 = vsub.f32 %v260, %v1531
        %1533 = vmatpush.msra.mxu0 %v1532
        %v1534 = vand.u32 %v256, 4294901760
        %v1535 = vsub.f32 %v256, %v1534
        %1536 = vmatmul.f32.gmra.mxu0 %v1535
        %v1537 = vpop.f32.mrf.mxu0
        %v1538 = vadd.f32 %v1484, %v1537
        %1539 = vdwg.mxu0
        %v1540 = vand.u32 %v320, 4294901760
        %1541 = vmatpush.msra.mxu0 %v1540
        %v1542 = vand.u32 %v316, 4294901760
        %1543 = vmatpush.msra.mxu0 %v1542
        %v1544 = vand.u32 %v312, 4294901760
        %1545 = vmatpush.msra.mxu0 %v1544
        %v1546 = vand.u32 %v308, 4294901760
        %1547 = vmatpush.msra.mxu0 %v1546
        %v1548 = vand.u32 %v304, 4294901760
        %1549 = vmatpush.msra.mxu0 %v1548
        %v1550 = vand.u32 %v300, 4294901760
        %1551 = vmatpush.msra.mxu0 %v1550
        %v1552 = vand.u32 %v296, 4294901760
        %1553 = vmatpush.msra.mxu0 %v1552
        %v1554 = vand.u32 %v292, 4294901760
        %1555 = vmatpush.msra.mxu0 %v1554
        %v1556 = vand.u32 %v288, 4294901760
        %1557 = vmatpush.msra.mxu0 %v1556
        %v1558 = vand.u32 %v284, 4294901760
        %1559 = vmatpush.msra.mxu0 %v1558
        %v1560 = vand.u32 %v280, 4294901760
        %1561 = vmatpush.msra.mxu0 %v1560
        %v1562 = vand.u32 %v276, 4294901760
        %1563 = vmatpush.msra.mxu0 %v1562
        %v1564 = vand.u32 %v272, 4294901760
        %1565 = vmatpush.msra.mxu0 %v1564
        %v1566 = vand.u32 %v268, 4294901760
        %1567 = vmatpush.msra.mxu0 %v1566
        %v1568 = vand.u32 %v264, 4294901760
        %1569 = vmatpush.msra.mxu0 %v1568
        %v1570 = vand.u32 %v260, 4294901760
        %1571 = vmatpush.msra.mxu0 %v1570
        %v1572 = vand.u32 %v256, 4294901760
        %v1573 = vsub.f32 %v256, %v1572
        %v1574 = vand.u32 %v1573, 4294901760
        %1575 = vmatmul.f32.gmra.mxu0 %v1574
        %v1576 = vpop.f32.mrf.mxu0
        %v1577 = vadd.f32 %v1538, %v1576
        %1578 = vdwg.mxu0
        %v1579 = vand.u32 %v320, 4294901760
        %v1580 = vsub.f32 %v320, %v1579
        %v1581 = vand.u32 %v1580, 4294901760
        %1582 = vmatpush.msra.mxu0 %v1581
        %v1583 = vand.u32 %v316, 4294901760
        %v1584 = vsub.f32 %v316, %v1583
        %v1585 = vand.u32 %v1584, 4294901760
        %1586 = vmatpush.msra.mxu0 %v1585
        %v1587 = vand.u32 %v312, 4294901760
        %v1588 = vsub.f32 %v312, %v1587
        %v1589 = vand.u32 %v1588, 4294901760
        %1590 = vmatpush.msra.mxu0 %v1589
        %v1591 = vand.u32 %v308, 4294901760
        %v1592 = vsub.f32 %v308, %v1591
        %v1593 = vand.u32 %v1592, 4294901760
        %1594 = vmatpush.msra.mxu0 %v1593
        %v1595 = vand.u32 %v304, 4294901760
        %v1596 = vsub.f32 %v304, %v1595
        %v1597 = vand.u32 %v1596, 4294901760
        %1598 = vmatpush.msra.mxu0 %v1597
        %v1599 = vand.u32 %v300, 4294901760
        %v1600 = vsub.f32 %v300, %v1599
        %v1601 = vand.u32 %v1600, 4294901760
        %1602 = vmatpush.msra.mxu0 %v1601
        %v1603 = vand.u32 %v296, 4294901760
        %v1604 = vsub.f32 %v296, %v1603
        %v1605 = vand.u32 %v1604, 4294901760
        %1606 = vmatpush.msra.mxu0 %v1605
        %v1607 = vand.u32 %v292, 4294901760
        %v1608 = vsub.f32 %v292, %v1607
        %v1609 = vand.u32 %v1608, 4294901760
        %1610 = vmatpush.msra.mxu0 %v1609
        %v1611 = vand.u32 %v288, 4294901760
        %v1612 = vsub.f32 %v288, %v1611
        %v1613 = vand.u32 %v1612, 4294901760
        %1614 = vmatpush.msra.mxu0 %v1613
        %v1615 = vand.u32 %v284, 4294901760
        %v1616 = vsub.f32 %v284, %v1615
        %v1617 = vand.u32 %v1616, 4294901760
        %1618 = vmatpush.msra.mxu0 %v1617
        %v1619 = vand.u32 %v280, 4294901760
        %v1620 = vsub.f32 %v280, %v1619
        %v1621 = vand.u32 %v1620, 4294901760
        %1622 = vmatpush.msra.mxu0 %v1621
        %v1623 = vand.u32 %v276, 4294901760
        %v1624 = vsub.f32 %v276, %v1623
        %v1625 = vand.u32 %v1624, 4294901760
        %1626 = vmatpush.msra.mxu0 %v1625
        %v1627 = vand.u32 %v272, 4294901760
        %v1628 = vsub.f32 %v272, %v1627
        %v1629 = vand.u32 %v1628, 4294901760
        %1630 = vmatpush.msra.mxu0 %v1629
        %v1631 = vand.u32 %v268, 4294901760
        %v1632 = vsub.f32 %v268, %v1631
        %v1633 = vand.u32 %v1632, 4294901760
        %1634 = vmatpush.msra.mxu0 %v1633
        %v1635 = vand.u32 %v264, 4294901760
        %v1636 = vsub.f32 %v264, %v1635
        %v1637 = vand.u32 %v1636, 4294901760
        %1638 = vmatpush.msra.mxu0 %v1637
        %v1639 = vand.u32 %v260, 4294901760
        %v1640 = vsub.f32 %v260, %v1639
        %v1641 = vand.u32 %v1640, 4294901760
        %1642 = vmatpush.msra.mxu0 %v1641
        %v1643 = vand.u32 %v256, 4294901760
        %1644 = vmatmul.f32.gmra.mxu0 %v1643
        %v1645 = vpop.f32.mrf.mxu0
        %v1646 = vadd.f32 %v1577, %v1645
        %1647 = vdwg.mxu0
        %v1648 = vand.u32 %v320, 4294901760
        %1649 = vmatpush.msra.mxu0 %v1648
        %v1650 = vand.u32 %v316, 4294901760
        %1651 = vmatpush.msra.mxu0 %v1650
        %v1652 = vand.u32 %v312, 4294901760
        %1653 = vmatpush.msra.mxu0 %v1652
        %v1654 = vand.u32 %v308, 4294901760
        %1655 = vmatpush.msra.mxu0 %v1654
        %v1656 = vand.u32 %v304, 4294901760
        %1657 = vmatpush.msra.mxu0 %v1656
        %v1658 = vand.u32 %v300, 4294901760
        %1659 = vmatpush.msra.mxu0 %v1658
        %v1660 = vand.u32 %v296, 4294901760
        %1661 = vmatpush.msra.mxu0 %v1660
        %v1662 = vand.u32 %v292, 4294901760
        %1663 = vmatpush.msra.mxu0 %v1662
        %v1664 = vand.u32 %v288, 4294901760
        %1665 = vmatpush.msra.mxu0 %v1664
        %v1666 = vand.u32 %v284, 4294901760
        %1667 = vmatpush.msra.mxu0 %v1666
        %v1668 = vand.u32 %v280, 4294901760
        %1669 = vmatpush.msra.mxu0 %v1668
        %v1670 = vand.u32 %v276, 4294901760
        %1671 = vmatpush.msra.mxu0 %v1670
        %v1672 = vand.u32 %v272, 4294901760
        %1673 = vmatpush.msra.mxu0 %v1672
        %v1674 = vand.u32 %v268, 4294901760
        %1675 = vmatpush.msra.mxu0 %v1674
        %v1676 = vand.u32 %v264, 4294901760
        %1677 = vmatpush.msra.mxu0 %v1676
        %v1678 = vand.u32 %v260, 4294901760
        %1679 = vmatpush.msra.mxu0 %v1678
        %v1680 = vand.u32 %v256, 4294901760
        %1681 = vmatmul.f32.gmra.mxu0 %v1680
        %v1682 = vpop.f32.mrf.mxu0
        %v1683 = vadd.f32 %v1646, %v1682
        %1684 = vdwg.mxu0
        %v1685 = vxor.u32 %v660, 2147483648
        %v1686 = vxor.u32 %v1001, 2147483648
        %v1687 = vmul.f32 %v1685, 1.442695
        %v1688 = vpow.pop %v1687
        %v1689 = vmul.f32 %v1686, 1.442695
        %v1690 = vpow.pop %v1689
        %v1691 = vadd.f32 %v1688, 1.0
        %v1692 = vadd.f32 %v1690, 1.0
        %v1693 = vrcp.pop %v1691
        %v1694 = vmul.f32 %v1691, %v1693
        %v1695 = vsub.f32 1.0, %v1694
        %v1696 = vmul.f32 %v1693, %v1695
        %v1697 = vadd.f32 %v1693, %v1696
        %vm1698 = vweird.f32 %v1691
        %vm1699 = vweird.f32 %v1693
        %vm1700 = vmor %vm1698, %vm1699
        %v1701 = vsel %vm1700, %v1693, %v1697
        %v1702 = vand.u32 2147483647, %v1691
        %vm1703 = vcmp.eq.f32.partialorder %v1702, 8.507059e+37
        %v1704 = vand.u32 %v1691, 2147483648
        %v1705 = vor.u32 1.1754944e-38, %v1704
        %v1706 = vsel %vm1703, %v1705, %v1701
        %v1707 = vmul.f32 1.0, %v1706
        %v1708 = vrcp.pop %v1692
        %v1709 = vmul.f32 %v1692, %v1708
        %v1710 = vsub.f32 1.0, %v1709
        %v1711 = vmul.f32 %v1708, %v1710
        %v1712 = vadd.f32 %v1708, %v1711
        %vm1713 = vweird.f32 %v1692
        %vm1714 = vweird.f32 %v1708
        %vm1715 = vmor %vm1713, %vm1714
        %v1716 = vsel %vm1715, %v1708, %v1712
        %v1717 = vand.u32 2147483647, %v1692
        %vm1718 = vcmp.eq.f32.partialorder %v1717, 8.507059e+37
        %v1719 = vand.u32 %v1692, 2147483648
        %v1720 = vor.u32 1.1754944e-38, %v1719
        %v1721 = vsel %vm1718, %v1720, %v1716
        %v1722 = vmul.f32 1.0, %v1721
        %v1723 = vmul.f32 %v660, %v1707
        %v1724 = vmul.f32 %v1001, %v1722
        %v1725 = vmul.f32 %v1723, %v1342
        %v1726 = vmul.f32 %v1724, %v1683
        %v1727 = vld [vmem:[#allocation2] sm:$0xff]
        %v1728 = vld [vmem:[#allocation8] sm:$0xff]
        %v1729 = vld [vmem:[#allocation8 + $0x8] sm:$0xff]
        %v1730 = vld [vmem:[#allocation8 + $0x10] sm:$0xff]
        %v1731 = vld [vmem:[#allocation8 + $0x18] sm:$0xff]
        %v1732 = vld [vmem:[#allocation8 + $0x20] sm:$0xff]
        %v1733 = vld [vmem:[#allocation8 + $0x28] sm:$0xff]
        %v1734 = vld [vmem:[#allocation8 + $0x30] sm:$0xff]
        %v1735 = vld [vmem:[#allocation8 + $0x38] sm:$0xff]
        %v1736 = vld [vmem:[#allocation8 + $0x40] sm:$0xff]
        %v1737 = vld [vmem:[#allocation8 + $0x48] sm:$0xff]
        %v1738 = vld [vmem:[#allocation8 + $0x50] sm:$0xff]
        %v1739 = vld [vmem:[#allocation8 + $0x58] sm:$0xff]
        %v1740 = vld [vmem:[#allocation8 + $0x60] sm:$0xff]
        %v1741 = vld [vmem:[#allocation8 + $0x68] sm:$0xff]
        %v1742 = vld [vmem:[#allocation8 + $0x70] sm:$0xff]
        %v1743 = vld [vmem:[#allocation8 + $0x78] sm:$0xff]
        %v1744 = vld [vmem:[#allocation8 + $0x80] sm:$0xff]
        %v1745 = vld [vmem:[#allocation8 + $0x88] sm:$0xff]
        %v1746 = vld [vmem:[#allocation8 + $0x90] sm:$0xff]
        %v1747 = vld [vmem:[#allocation8 + $0x98] sm:$0xff]
        %v1748 = vld [vmem:[#allocation8 + $0xa0] sm:$0xff]
        %v1749 = vld [vmem:[#allocation8 + $0xa8] sm:$0xff]
        %v1750 = vld [vmem:[#allocation8 + $0xb0] sm:$0xff]
        %v1751 = vld [vmem:[#allocation8 + $0xb8] sm:$0xff]
        %v1752 = vld [vmem:[#allocation8 + $0xc0] sm:$0xff]
        %v1753 = vld [vmem:[#allocation8 + $0xc8] sm:$0xff]
        %v1754 = vld [vmem:[#allocation8 + $0xd0] sm:$0xff]
        %v1755 = vld [vmem:[#allocation8 + $0xd8] sm:$0xff]
        %v1756 = vld [vmem:[#allocation8 + $0xe0] sm:$0xff]
        %v1757 = vld [vmem:[#allocation8 + $0xe8] sm:$0xff]
        %v1758 = vld [vmem:[#allocation8 + $0xf0] sm:$0xff]
        %v1759 = vld [vmem:[#allocation8 + $0xf8] sm:$0xff]
        %v1760 = vand.u32 %v1743, 4294901760
        %1761 = vmatpush.msra.mxu0 %v1760
        %v1762 = vand.u32 %v1742, 4294901760
        %1763 = vmatpush.msra.mxu0 %v1762
        %v1764 = vand.u32 %v1741, 4294901760
        %1765 = vmatpush.msra.mxu0 %v1764
        %v1766 = vand.u32 %v1740, 4294901760
        %1767 = vmatpush.msra.mxu0 %v1766
        %v1768 = vand.u32 %v1739, 4294901760
        %1769 = vmatpush.msra.mxu0 %v1768
        %v1770 = vand.u32 %v1738, 4294901760
        %1771 = vmatpush.msra.mxu0 %v1770
        %v1772 = vand.u32 %v1737, 4294901760
        %1773 = vmatpush.msra.mxu0 %v1772
        %v1774 = vand.u32 %v1736, 4294901760
        %1775 = vmatpush.msra.mxu0 %v1774
        %v1776 = vand.u32 %v1735, 4294901760
        %1777 = vmatpush.msra.mxu0 %v1776
        %v1778 = vand.u32 %v1734, 4294901760
        %1779 = vmatpush.msra.mxu0 %v1778
        %v1780 = vand.u32 %v1733, 4294901760
        %1781 = vmatpush.msra.mxu0 %v1780
        %v1782 = vand.u32 %v1732, 4294901760
        %1783 = vmatpush.msra.mxu0 %v1782
        %v1784 = vand.u32 %v1731, 4294901760
        %1785 = vmatpush.msra.mxu0 %v1784
        %v1786 = vand.u32 %v1730, 4294901760
        %1787 = vmatpush.msra.mxu0 %v1786
        %v1788 = vand.u32 %v1729, 4294901760
        %1789 = vmatpush.msra.mxu0 %v1788
        %v1790 = vand.u32 %v1728, 4294901760
        %1791 = vmatpush.msra.mxu0 %v1790
        %v1792 = vand.u32 %v1725, 4294901760
        %v1793 = vsub.f32 %v1725, %v1792
        %v1794 = vand.u32 %v1793, 4294901760
        %v1795 = vsub.f32 %v1793, %v1794
        %v1796 = vand.u32 %v1795, 4294901760
        %1797 = vmatmul.f32.gmra.mxu0 %v1796
        %v1798 = vpop.f32.mrf.mxu0
        %v1799 = vadd.f32 0.0, %v1798
        %1800 = vdwg.mxu0
        %v1801 = vand.u32 %v1743, 4294901760
        %v1802 = vsub.f32 %v1743, %v1801
        %v1803 = vand.u32 %v1802, 4294901760
        %v1804 = vsub.f32 %v1802, %v1803
        %v1805 = vand.u32 %v1804, 4294901760
        %1806 = vmatpush.msra.mxu0 %v1805
        %v1807 = vand.u32 %v1742, 4294901760
        %v1808 = vsub.f32 %v1742, %v1807
        %v1809 = vand.u32 %v1808, 4294901760
        %v1810 = vsub.f32 %v1808, %v1809
        %v1811 = vand.u32 %v1810, 4294901760
        %1812 = vmatpush.msra.mxu0 %v1811
        %v1813 = vand.u32 %v1741, 4294901760
        %v1814 = vsub.f32 %v1741, %v1813
        %v1815 = vand.u32 %v1814, 4294901760
        %v1816 = vsub.f32 %v1814, %v1815
        %v1817 = vand.u32 %v1816, 4294901760
        %1818 = vmatpush.msra.mxu0 %v1817
        %v1819 = vand.u32 %v1740, 4294901760
        %v1820 = vsub.f32 %v1740, %v1819
        %v1821 = vand.u32 %v1820, 4294901760
        %v1822 = vsub.f32 %v1820, %v1821
        %v1823 = vand.u32 %v1822, 4294901760
        %1824 = vmatpush.msra.mxu0 %v1823
        %v1825 = vand.u32 %v1739, 4294901760
        %v1826 = vsub.f32 %v1739, %v1825
        %v1827 = vand.u32 %v1826, 4294901760
        %v1828 = vsub.f32 %v1826, %v1827
        %v1829 = vand.u32 %v1828, 4294901760
        %1830 = vmatpush.msra.mxu0 %v1829
        %v1831 = vand.u32 %v1738, 4294901760
        %v1832 = vsub.f32 %v1738, %v1831
        %v1833 = vand.u32 %v1832, 4294901760
        %v1834 = vsub.f32 %v1832, %v1833
        %v1835 = vand.u32 %v1834, 4294901760
        %1836 = vmatpush.msra.mxu0 %v1835
        %v1837 = vand.u32 %v1737, 4294901760
        %v1838 = vsub.f32 %v1737, %v1837
        %v1839 = vand.u32 %v1838, 4294901760
        %v1840 = vsub.f32 %v1838, %v1839
        %v1841 = vand.u32 %v1840, 4294901760
        %1842 = vmatpush.msra.mxu0 %v1841
        %v1843 = vand.u32 %v1736, 4294901760
        %v1844 = vsub.f32 %v1736, %v1843
        %v1845 = vand.u32 %v1844, 4294901760
        %v1846 = vsub.f32 %v1844, %v1845
        %v1847 = vand.u32 %v1846, 4294901760
        %1848 = vmatpush.msra.mxu0 %v1847
        %v1849 = vand.u32 %v1735, 4294901760
        %v1850 = vsub.f32 %v1735, %v1849
        %v1851 = vand.u32 %v1850, 4294901760
        %v1852 = vsub.f32 %v1850, %v1851
        %v1853 = vand.u32 %v1852, 4294901760
        %1854 = vmatpush.msra.mxu0 %v1853
        %v1855 = vand.u32 %v1734, 4294901760
        %v1856 = vsub.f32 %v1734, %v1855
        %v1857 = vand.u32 %v1856, 4294901760
        %v1858 = vsub.f32 %v1856, %v1857
        %v1859 = vand.u32 %v1858, 4294901760
        %1860 = vmatpush.msra.mxu0 %v1859
        %v1861 = vand.u32 %v1733, 4294901760
        %v1862 = vsub.f32 %v1733, %v1861
        %v1863 = vand.u32 %v1862, 4294901760
        %v1864 = vsub.f32 %v1862, %v1863
        %v1865 = vand.u32 %v1864, 4294901760
        %1866 = vmatpush.msra.mxu0 %v1865
        %v1867 = vand.u32 %v1732, 4294901760
        %v1868 = vsub.f32 %v1732, %v1867
        %v1869 = vand.u32 %v1868, 4294901760
        %v1870 = vsub.f32 %v1868, %v1869
        %v1871 = vand.u32 %v1870, 4294901760
        %1872 = vmatpush.msra.mxu0 %v1871
        %v1873 = vand.u32 %v1731, 4294901760
        %v1874 = vsub.f32 %v1731, %v1873
        %v1875 = vand.u32 %v1874, 4294901760
        %v1876 = vsub.f32 %v1874, %v1875
        %v1877 = vand.u32 %v1876, 4294901760
        %1878 = vmatpush.msra.mxu0 %v1877
        %v1879 = vand.u32 %v1730, 4294901760
        %v1880 = vsub.f32 %v1730, %v1879
        %v1881 = vand.u32 %v1880, 4294901760
        %v1882 = vsub.f32 %v1880, %v1881
        %v1883 = vand.u32 %v1882, 4294901760
        %1884 = vmatpush.msra.mxu0 %v1883
        %v1885 = vand.u32 %v1729, 4294901760
        %v1886 = vsub.f32 %v1729, %v1885
        %v1887 = vand.u32 %v1886, 4294901760
        %v1888 = vsub.f32 %v1886, %v1887
        %v1889 = vand.u32 %v1888, 4294901760
        %1890 = vmatpush.msra.mxu0 %v1889
        %v1891 = vand.u32 %v1728, 4294901760
        %v1892 = vsub.f32 %v1728, %v1891
        %v1893 = vand.u32 %v1892, 4294901760
        %v1894 = vsub.f32 %v1892, %v1893
        %v1895 = vand.u32 %v1894, 4294901760
        %1896 = vmatpush.msra.mxu0 %v1895
        %v1897 = vand.u32 %v1725, 4294901760
        %1898 = vmatmul.f32.gmra.mxu0 %v1897
        %v1899 = vpop.f32.mrf.mxu0
        %v1900 = vadd.f32 %v1799, %v1899
        %1901 = vdwg.mxu0
        %v1902 = vand.u32 %v1743, 4294901760
        %v1903 = vsub.f32 %v1743, %v1902
        %1904 = vmatpush.msra.mxu0 %v1903
        %v1905 = vand.u32 %v1742, 4294901760
        %v1906 = vsub.f32 %v1742, %v1905
        %1907 = vmatpush.msra.mxu0 %v1906
        %v1908 = vand.u32 %v1741, 4294901760
        %v1909 = vsub.f32 %v1741, %v1908
        %1910 = vmatpush.msra.mxu0 %v1909
        %v1911 = vand.u32 %v1740, 4294901760
        %v1912 = vsub.f32 %v1740, %v1911
        %1913 = vmatpush.msra.mxu0 %v1912
        %v1914 = vand.u32 %v1739, 4294901760
        %v1915 = vsub.f32 %v1739, %v1914
        %1916 = vmatpush.msra.mxu0 %v1915
        %v1917 = vand.u32 %v1738, 4294901760
        %v1918 = vsub.f32 %v1738, %v1917
        %1919 = vmatpush.msra.mxu0 %v1918
        %v1920 = vand.u32 %v1737, 4294901760
        %v1921 = vsub.f32 %v1737, %v1920
        %1922 = vmatpush.msra.mxu0 %v1921
        %v1923 = vand.u32 %v1736, 4294901760
        %v1924 = vsub.f32 %v1736, %v1923
        %1925 = vmatpush.msra.mxu0 %v1924
        %v1926 = vand.u32 %v1735, 4294901760
        %v1927 = vsub.f32 %v1735, %v1926
        %1928 = vmatpush.msra.mxu0 %v1927
        %v1929 = vand.u32 %v1734, 4294901760
        %v1930 = vsub.f32 %v1734, %v1929
        %1931 = vmatpush.msra.mxu0 %v1930
        %v1932 = vand.u32 %v1733, 4294901760
        %v1933 = vsub.f32 %v1733, %v1932
        %1934 = vmatpush.msra.mxu0 %v1933
        %v1935 = vand.u32 %v1732, 4294901760
        %v1936 = vsub.f32 %v1732, %v1935
        %1937 = vmatpush.msra.mxu0 %v1936
        %v1938 = vand.u32 %v1731, 4294901760
        %v1939 = vsub.f32 %v1731, %v1938
        %1940 = vmatpush.msra.mxu0 %v1939
        %v1941 = vand.u32 %v1730, 4294901760
        %v1942 = vsub.f32 %v1730, %v1941
        %1943 = vmatpush.msra.mxu0 %v1942
        %v1944 = vand.u32 %v1729, 4294901760
        %v1945 = vsub.f32 %v1729, %v1944
        %1946 = vmatpush.msra.mxu0 %v1945
        %v1947 = vand.u32 %v1728, 4294901760
        %v1948 = vsub.f32 %v1728, %v1947
        %1949 = vmatpush.msra.mxu0 %v1948
        %v1950 = vand.u32 %v1725, 4294901760
        %v1951 = vsub.f32 %v1725, %v1950
        %1952 = vmatmul.f32.gmra.mxu0 %v1951
        %v1953 = vpop.f32.mrf.mxu0
        %v1954 = vadd.f32 %v1900, %v1953
        %1955 = vdwg.mxu0
        %v1956 = vand.u32 %v1743, 4294901760
        %1957 = vmatpush.msra.mxu0 %v1956
        %v1958 = vand.u32 %v1742, 4294901760
        %1959 = vmatpush.msra.mxu0 %v1958
        %v1960 = vand.u32 %v1741, 4294901760
        %1961 = vmatpush.msra.mxu0 %v1960
        %v1962 = vand.u32 %v1740, 4294901760
        %1963 = vmatpush.msra.mxu0 %v1962
        %v1964 = vand.u32 %v1739, 4294901760
        %1965 = vmatpush.msra.mxu0 %v1964
        %v1966 = vand.u32 %v1738, 4294901760
        %1967 = vmatpush.msra.mxu0 %v1966
        %v1968 = vand.u32 %v1737, 4294901760
        %1969 = vmatpush.msra.mxu0 %v1968
        %v1970 = vand.u32 %v1736, 4294901760
        %1971 = vmatpush.msra.mxu0 %v1970
        %v1972 = vand.u32 %v1735, 4294901760
        %1973 = vmatpush.msra.mxu0 %v1972
        %v1974 = vand.u32 %v1734, 4294901760
        %1975 = vmatpush.msra.mxu0 %v1974
        %v1976 = vand.u32 %v1733, 4294901760
        %1977 = vmatpush.msra.mxu0 %v1976
        %v1978 = vand.u32 %v1732, 4294901760
        %1979 = vmatpush.msra.mxu0 %v1978
        %v1980 = vand.u32 %v1731, 4294901760
        %1981 = vmatpush.msra.mxu0 %v1980
        %v1982 = vand.u32 %v1730, 4294901760
        %1983 = vmatpush.msra.mxu0 %v1982
        %v1984 = vand.u32 %v1729, 4294901760
        %1985 = vmatpush.msra.mxu0 %v1984
        %v1986 = vand.u32 %v1728, 4294901760
        %1987 = vmatpush.msra.mxu0 %v1986
        %v1988 = vand.u32 %v1725, 4294901760
        %v1989 = vsub.f32 %v1725, %v1988
        %v1990 = vand.u32 %v1989, 4294901760
        %1991 = vmatmul.f32.gmra.mxu0 %v1990
        %v1992 = vpop.f32.mrf.mxu0
        %v1993 = vadd.f32 %v1954, %v1992
        %1994 = vdwg.mxu0
        %v1995 = vand.u32 %v1743, 4294901760
        %v1996 = vsub.f32 %v1743, %v1995
        %v1997 = vand.u32 %v1996, 4294901760
        %1998 = vmatpush.msra.mxu0 %v1997
        %v1999 = vand.u32 %v1742, 4294901760
        %v2000 = vsub.f32 %v1742, %v1999
        %v2001 = vand.u32 %v2000, 4294901760
        %2002 = vmatpush.msra.mxu0 %v2001
        %v2003 = vand.u32 %v1741, 4294901760
        %v2004 = vsub.f32 %v1741, %v2003
        %v2005 = vand.u32 %v2004, 4294901760
        %2006 = vmatpush.msra.mxu0 %v2005
        %v2007 = vand.u32 %v1740, 4294901760
        %v2008 = vsub.f32 %v1740, %v2007
        %v2009 = vand.u32 %v2008, 4294901760
        %2010 = vmatpush.msra.mxu0 %v2009
        %v2011 = vand.u32 %v1739, 4294901760
        %v2012 = vsub.f32 %v1739, %v2011
        %v2013 = vand.u32 %v2012, 4294901760
        %2014 = vmatpush.msra.mxu0 %v2013
        %v2015 = vand.u32 %v1738, 4294901760
        %v2016 = vsub.f32 %v1738, %v2015
        %v2017 = vand.u32 %v2016, 4294901760
        %2018 = vmatpush.msra.mxu0 %v2017
        %v2019 = vand.u32 %v1737, 4294901760
        %v2020 = vsub.f32 %v1737, %v2019
        %v2021 = vand.u32 %v2020, 4294901760
        %2022 = vmatpush.msra.mxu0 %v2021
        %v2023 = vand.u32 %v1736, 4294901760
        %v2024 = vsub.f32 %v1736, %v2023
        %v2025 = vand.u32 %v2024, 4294901760
        %2026 = vmatpush.msra.mxu0 %v2025
        %v2027 = vand.u32 %v1735, 4294901760
        %v2028 = vsub.f32 %v1735, %v2027
        %v2029 = vand.u32 %v2028, 4294901760
        %2030 = vmatpush.msra.mxu0 %v2029
        %v2031 = vand.u32 %v1734, 4294901760
        %v2032 = vsub.f32 %v1734, %v2031
        %v2033 = vand.u32 %v2032, 4294901760
        %2034 = vmatpush.msra.mxu0 %v2033
        %v2035 = vand.u32 %v1733, 4294901760
        %v2036 = vsub.f32 %v1733, %v2035
        %v2037 = vand.u32 %v2036, 4294901760
        %2038 = vmatpush.msra.mxu0 %v2037
        %v2039 = vand.u32 %v1732, 4294901760
        %v2040 = vsub.f32 %v1732, %v2039
        %v2041 = vand.u32 %v2040, 4294901760
        %2042 = vmatpush.msra.mxu0 %v2041
        %v2043 = vand.u32 %v1731, 4294901760
        %v2044 = vsub.f32 %v1731, %v2043
        %v2045 = vand.u32 %v2044, 4294901760
        %2046 = vmatpush.msra.mxu0 %v2045
        %v2047 = vand.u32 %v1730, 4294901760
        %v2048 = vsub.f32 %v1730, %v2047
        %v2049 = vand.u32 %v2048, 4294901760
        %2050 = vmatpush.msra.mxu0 %v2049
        %v2051 = vand.u32 %v1729, 4294901760
        %v2052 = vsub.f32 %v1729, %v2051
        %v2053 = vand.u32 %v2052, 4294901760
        %2054 = vmatpush.msra.mxu0 %v2053
        %v2055 = vand.u32 %v1728, 4294901760
        %v2056 = vsub.f32 %v1728, %v2055
        %v2057 = vand.u32 %v2056, 4294901760
        %2058 = vmatpush.msra.mxu0 %v2057
        %v2059 = vand.u32 %v1725, 4294901760
        %2060 = vmatmul.f32.gmra.mxu0 %v2059
        %v2061 = vpop.f32.mrf.mxu0
        %v2062 = vadd.f32 %v1993, %v2061
        %2063 = vdwg.mxu0
        %v2064 = vand.u32 %v1743, 4294901760
        %2065 = vmatpush.msra.mxu0 %v2064
        %v2066 = vand.u32 %v1742, 4294901760
        %2067 = vmatpush.msra.mxu0 %v2066
        %v2068 = vand.u32 %v1741, 4294901760
        %2069 = vmatpush.msra.mxu0 %v2068
        %v2070 = vand.u32 %v1740, 4294901760
        %2071 = vmatpush.msra.mxu0 %v2070
        %v2072 = vand.u32 %v1739, 4294901760
        %2073 = vmatpush.msra.mxu0 %v2072
        %v2074 = vand.u32 %v1738, 4294901760
        %2075 = vmatpush.msra.mxu0 %v2074
        %v2076 = vand.u32 %v1737, 4294901760
        %2077 = vmatpush.msra.mxu0 %v2076
        %v2078 = vand.u32 %v1736, 4294901760
        %2079 = vmatpush.msra.mxu0 %v2078
        %v2080 = vand.u32 %v1735, 4294901760
        %2081 = vmatpush.msra.mxu0 %v2080
        %v2082 = vand.u32 %v1734, 4294901760
        %2083 = vmatpush.msra.mxu0 %v2082
        %v2084 = vand.u32 %v1733, 4294901760
        %2085 = vmatpush.msra.mxu0 %v2084
        %v2086 = vand.u32 %v1732, 4294901760
        %2087 = vmatpush.msra.mxu0 %v2086
        %v2088 = vand.u32 %v1731, 4294901760
        %2089 = vmatpush.msra.mxu0 %v2088
        %v2090 = vand.u32 %v1730, 4294901760
        %2091 = vmatpush.msra.mxu0 %v2090
        %v2092 = vand.u32 %v1729, 4294901760
        %2093 = vmatpush.msra.mxu0 %v2092
        %v2094 = vand.u32 %v1728, 4294901760
        %2095 = vmatpush.msra.mxu0 %v2094
        %v2096 = vand.u32 %v1725, 4294901760
        %2097 = vmatmul.f32.gmra.mxu0 %v2096
        %v2098 = vpop.f32.mrf.mxu0
        %v2099 = vadd.f32 %v2062, %v2098
        %2100 = vdwg.mxu0
        %v2101 = vand.u32 %v1759, 4294901760
        %2102 = vmatpush.msra.mxu0 %v2101
        %v2103 = vand.u32 %v1758, 4294901760
        %2104 = vmatpush.msra.mxu0 %v2103
        %v2105 = vand.u32 %v1757, 4294901760
        %2106 = vmatpush.msra.mxu0 %v2105
        %v2107 = vand.u32 %v1756, 4294901760
        %2108 = vmatpush.msra.mxu0 %v2107
        %v2109 = vand.u32 %v1755, 4294901760
        %2110 = vmatpush.msra.mxu0 %v2109
        %v2111 = vand.u32 %v1754, 4294901760
        %2112 = vmatpush.msra.mxu0 %v2111
        %v2113 = vand.u32 %v1753, 4294901760
        %2114 = vmatpush.msra.mxu0 %v2113
        %v2115 = vand.u32 %v1752, 4294901760
        %2116 = vmatpush.msra.mxu0 %v2115
        %v2117 = vand.u32 %v1751, 4294901760
        %2118 = vmatpush.msra.mxu0 %v2117
        %v2119 = vand.u32 %v1750, 4294901760
        %2120 = vmatpush.msra.mxu0 %v2119
        %v2121 = vand.u32 %v1749, 4294901760
        %2122 = vmatpush.msra.mxu0 %v2121
        %v2123 = vand.u32 %v1748, 4294901760
        %2124 = vmatpush.msra.mxu0 %v2123
        %v2125 = vand.u32 %v1747, 4294901760
        %2126 = vmatpush.msra.mxu0 %v2125
        %v2127 = vand.u32 %v1746, 4294901760
        %2128 = vmatpush.msra.mxu0 %v2127
        %v2129 = vand.u32 %v1745, 4294901760
        %2130 = vmatpush.msra.mxu0 %v2129
        %v2131 = vand.u32 %v1744, 4294901760
        %2132 = vmatpush.msra.mxu0 %v2131
        %v2133 = vand.u32 %v1726, 4294901760
        %v2134 = vsub.f32 %v1726, %v2133
        %v2135 = vand.u32 %v2134, 4294901760
        %v2136 = vsub.f32 %v2134, %v2135
        %v2137 = vand.u32 %v2136, 4294901760
        %2138 = vmatmul.f32.gmra.mxu0 %v2137
        %v2139 = vpop.f32.mrf.mxu0
        %v2140 = vadd.f32 %v2099, %v2139
        %2141 = vdwg.mxu0
        %v2142 = vand.u32 %v1759, 4294901760
        %v2143 = vsub.f32 %v1759, %v2142
        %v2144 = vand.u32 %v2143, 4294901760
        %v2145 = vsub.f32 %v2143, %v2144
        %v2146 = vand.u32 %v2145, 4294901760
        %2147 = vmatpush.msra.mxu0 %v2146
        %v2148 = vand.u32 %v1758, 4294901760
        %v2149 = vsub.f32 %v1758, %v2148
        %v2150 = vand.u32 %v2149, 4294901760
        %v2151 = vsub.f32 %v2149, %v2150
        %v2152 = vand.u32 %v2151, 4294901760
        %2153 = vmatpush.msra.mxu0 %v2152
        %v2154 = vand.u32 %v1757, 4294901760
        %v2155 = vsub.f32 %v1757, %v2154
        %v2156 = vand.u32 %v2155, 4294901760
        %v2157 = vsub.f32 %v2155, %v2156
        %v2158 = vand.u32 %v2157, 4294901760
        %2159 = vmatpush.msra.mxu0 %v2158
        %v2160 = vand.u32 %v1756, 4294901760
        %v2161 = vsub.f32 %v1756, %v2160
        %v2162 = vand.u32 %v2161, 4294901760
        %v2163 = vsub.f32 %v2161, %v2162
        %v2164 = vand.u32 %v2163, 4294901760
        %2165 = vmatpush.msra.mxu0 %v2164
        %v2166 = vand.u32 %v1755, 4294901760
        %v2167 = vsub.f32 %v1755, %v2166
        %v2168 = vand.u32 %v2167, 4294901760
        %v2169 = vsub.f32 %v2167, %v2168
        %v2170 = vand.u32 %v2169, 4294901760
        %2171 = vmatpush.msra.mxu0 %v2170
        %v2172 = vand.u32 %v1754, 4294901760
        %v2173 = vsub.f32 %v1754, %v2172
        %v2174 = vand.u32 %v2173, 4294901760
        %v2175 = vsub.f32 %v2173, %v2174
        %v2176 = vand.u32 %v2175, 4294901760
        %2177 = vmatpush.msra.mxu0 %v2176
        %v2178 = vand.u32 %v1753, 4294901760
        %v2179 = vsub.f32 %v1753, %v2178
        %v2180 = vand.u32 %v2179, 4294901760
        %v2181 = vsub.f32 %v2179, %v2180
        %v2182 = vand.u32 %v2181, 4294901760
        %2183 = vmatpush.msra.mxu0 %v2182
        %v2184 = vand.u32 %v1752, 4294901760
        %v2185 = vsub.f32 %v1752, %v2184
        %v2186 = vand.u32 %v2185, 4294901760
        %v2187 = vsub.f32 %v2185, %v2186
        %v2188 = vand.u32 %v2187, 4294901760
        %2189 = vmatpush.msra.mxu0 %v2188
        %v2190 = vand.u32 %v1751, 4294901760
        %v2191 = vsub.f32 %v1751, %v2190
        %v2192 = vand.u32 %v2191, 4294901760
        %v2193 = vsub.f32 %v2191, %v2192
        %v2194 = vand.u32 %v2193, 4294901760
        %2195 = vmatpush.msra.mxu0 %v2194
        %v2196 = vand.u32 %v1750, 4294901760
        %v2197 = vsub.f32 %v1750, %v2196
        %v2198 = vand.u32 %v2197, 4294901760
        %v2199 = vsub.f32 %v2197, %v2198
        %v2200 = vand.u32 %v2199, 4294901760
        %2201 = vmatpush.msra.mxu0 %v2200
        %v2202 = vand.u32 %v1749, 4294901760
        %v2203 = vsub.f32 %v1749, %v2202
        %v2204 = vand.u32 %v2203, 4294901760
        %v2205 = vsub.f32 %v2203, %v2204
        %v2206 = vand.u32 %v2205, 4294901760
        %2207 = vmatpush.msra.mxu0 %v2206
        %v2208 = vand.u32 %v1748, 4294901760
        %v2209 = vsub.f32 %v1748, %v2208
        %v2210 = vand.u32 %v2209, 4294901760
        %v2211 = vsub.f32 %v2209, %v2210
        %v2212 = vand.u32 %v2211, 4294901760
        %2213 = vmatpush.msra.mxu0 %v2212
        %v2214 = vand.u32 %v1747, 4294901760
        %v2215 = vsub.f32 %v1747, %v2214
        %v2216 = vand.u32 %v2215, 4294901760
        %v2217 = vsub.f32 %v2215, %v2216
        %v2218 = vand.u32 %v2217, 4294901760
        %2219 = vmatpush.msra.mxu0 %v2218
        %v2220 = vand.u32 %v1746, 4294901760
        %v2221 = vsub.f32 %v1746, %v2220
        %v2222 = vand.u32 %v2221, 4294901760
        %v2223 = vsub.f32 %v2221, %v2222
        %v2224 = vand.u32 %v2223, 4294901760
        %2225 = vmatpush.msra.mxu0 %v2224
        %v2226 = vand.u32 %v1745, 4294901760
        %v2227 = vsub.f32 %v1745, %v2226
        %v2228 = vand.u32 %v2227, 4294901760
        %v2229 = vsub.f32 %v2227, %v2228
        %v2230 = vand.u32 %v2229, 4294901760
        %2231 = vmatpush.msra.mxu0 %v2230
        %v2232 = vand.u32 %v1744, 4294901760
        %v2233 = vsub.f32 %v1744, %v2232
        %v2234 = vand.u32 %v2233, 4294901760
        %v2235 = vsub.f32 %v2233, %v2234
        %v2236 = vand.u32 %v2235, 4294901760
        %2237 = vmatpush.msra.mxu0 %v2236
        %v2238 = vand.u32 %v1726, 4294901760
        %2239 = vmatmul.f32.gmra.mxu0 %v2238
        %v2240 = vpop.f32.mrf.mxu0
        %v2241 = vadd.f32 %v2140, %v2240
        %2242 = vdwg.mxu0
        %v2243 = vand.u32 %v1759, 4294901760
        %v2244 = vsub.f32 %v1759, %v2243
        %2245 = vmatpush.msra.mxu0 %v2244
        %v2246 = vand.u32 %v1758, 4294901760
        %v2247 = vsub.f32 %v1758, %v2246
        %2248 = vmatpush.msra.mxu0 %v2247
        %v2249 = vand.u32 %v1757, 4294901760
        %v2250 = vsub.f32 %v1757, %v2249
        %2251 = vmatpush.msra.mxu0 %v2250
        %v2252 = vand.u32 %v1756, 4294901760
        %v2253 = vsub.f32 %v1756, %v2252
        %2254 = vmatpush.msra.mxu0 %v2253
        %v2255 = vand.u32 %v1755, 4294901760
        %v2256 = vsub.f32 %v1755, %v2255
        %2257 = vmatpush.msra.mxu0 %v2256
        %v2258 = vand.u32 %v1754, 4294901760
        %v2259 = vsub.f32 %v1754, %v2258
        %2260 = vmatpush.msra.mxu0 %v2259
        %v2261 = vand.u32 %v1753, 4294901760
        %v2262 = vsub.f32 %v1753, %v2261
        %2263 = vmatpush.msra.mxu0 %v2262
        %v2264 = vand.u32 %v1752, 4294901760
        %v2265 = vsub.f32 %v1752, %v2264
        %2266 = vmatpush.msra.mxu0 %v2265
        %v2267 = vand.u32 %v1751, 4294901760
        %v2268 = vsub.f32 %v1751, %v2267
        %2269 = vmatpush.msra.mxu0 %v2268
        %v2270 = vand.u32 %v1750, 4294901760
        %v2271 = vsub.f32 %v1750, %v2270
        %2272 = vmatpush.msra.mxu0 %v2271
        %v2273 = vand.u32 %v1749, 4294901760
        %v2274 = vsub.f32 %v1749, %v2273
        %2275 = vmatpush.msra.mxu0 %v2274
        %v2276 = vand.u32 %v1748, 4294901760
        %v2277 = vsub.f32 %v1748, %v2276
        %2278 = vmatpush.msra.mxu0 %v2277
        %v2279 = vand.u32 %v1747, 4294901760
        %v2280 = vsub.f32 %v1747, %v2279
        %2281 = vmatpush.msra.mxu0 %v2280
        %v2282 = vand.u32 %v1746, 4294901760
        %v2283 = vsub.f32 %v1746, %v2282
        %2284 = vmatpush.msra.mxu0 %v2283
        %v2285 = vand.u32 %v1745, 4294901760
        %v2286 = vsub.f32 %v1745, %v2285
        %2287 = vmatpush.msra.mxu0 %v2286
        %v2288 = vand.u32 %v1744, 4294901760
        %v2289 = vsub.f32 %v1744, %v2288
        %2290 = vmatpush.msra.mxu0 %v2289
        %v2291 = vand.u32 %v1726, 4294901760
        %v2292 = vsub.f32 %v1726, %v2291
        %2293 = vmatmul.f32.gmra.mxu0 %v2292
        %v2294 = vpop.f32.mrf.mxu0
        %v2295 = vadd.f32 %v2241, %v2294
        %2296 = vdwg.mxu0
        %v2297 = vand.u32 %v1759, 4294901760
        %2298 = vmatpush.msra.mxu0 %v2297
        %v2299 = vand.u32 %v1758, 4294901760
        %2300 = vmatpush.msra.mxu0 %v2299
        %v2301 = vand.u32 %v1757, 4294901760
        %2302 = vmatpush.msra.mxu0 %v2301
        %v2303 = vand.u32 %v1756, 4294901760
        %2304 = vmatpush.msra.mxu0 %v2303
        %v2305 = vand.u32 %v1755, 4294901760
        %2306 = vmatpush.msra.mxu0 %v2305
        %v2307 = vand.u32 %v1754, 4294901760
        %2308 = vmatpush.msra.mxu0 %v2307
        %v2309 = vand.u32 %v1753, 4294901760
        %2310 = vmatpush.msra.mxu0 %v2309
        %v2311 = vand.u32 %v1752, 4294901760
        %2312 = vmatpush.msra.mxu0 %v2311
        %v2313 = vand.u32 %v1751, 4294901760
        %2314 = vmatpush.msra.mxu0 %v2313
        %v2315 = vand.u32 %v1750, 4294901760
        %2316 = vmatpush.msra.mxu0 %v2315
        %v2317 = vand.u32 %v1749, 4294901760
        %2318 = vmatpush.msra.mxu0 %v2317
        %v2319 = vand.u32 %v1748, 4294901760
        %2320 = vmatpush.msra.mxu0 %v2319
        %v2321 = vand.u32 %v1747, 4294901760
        %2322 = vmatpush.msra.mxu0 %v2321
        %v2323 = vand.u32 %v1746, 4294901760
        %2324 = vmatpush.msra.mxu0 %v2323
        %v2325 = vand.u32 %v1745, 4294901760
        %2326 = vmatpush.msra.mxu0 %v2325
        %v2327 = vand.u32 %v1744, 4294901760
        %2328 = vmatpush.msra.mxu0 %v2327
        %v2329 = vand.u32 %v1726, 4294901760
        %v2330 = vsub.f32 %v1726, %v2329
        %v2331 = vand.u32 %v2330, 4294901760
        %2332 = vmatmul.f32.gmra.mxu0 %v2331
        %v2333 = vpop.f32.mrf.mxu0
        %v2334 = vadd.f32 %v2295, %v2333
        %2335 = vdwg.mxu0
        %v2336 = vand.u32 %v1759, 4294901760
        %v2337 = vsub.f32 %v1759, %v2336
        %v2338 = vand.u32 %v2337, 4294901760
        %2339 = vmatpush.msra.mxu0 %v2338
        %v2340 = vand.u32 %v1758, 4294901760
        %v2341 = vsub.f32 %v1758, %v2340
        %v2342 = vand.u32 %v2341, 4294901760
        %2343 = vmatpush.msra.mxu0 %v2342
        %v2344 = vand.u32 %v1757, 4294901760
        %v2345 = vsub.f32 %v1757, %v2344
        %v2346 = vand.u32 %v2345, 4294901760
        %2347 = vmatpush.msra.mxu0 %v2346
        %v2348 = vand.u32 %v1756, 4294901760
        %v2349 = vsub.f32 %v1756, %v2348
        %v2350 = vand.u32 %v2349, 4294901760
        %2351 = vmatpush.msra.mxu0 %v2350
        %v2352 = vand.u32 %v1755, 4294901760
        %v2353 = vsub.f32 %v1755, %v2352
        %v2354 = vand.u32 %v2353, 4294901760
        %2355 = vmatpush.msra.mxu0 %v2354
        %v2356 = vand.u32 %v1754, 4294901760
        %v2357 = vsub.f32 %v1754, %v2356
        %v2358 = vand.u32 %v2357, 4294901760
        %2359 = vmatpush.msra.mxu0 %v2358
        %v2360 = vand.u32 %v1753, 4294901760
        %v2361 = vsub.f32 %v1753, %v2360
        %v2362 = vand.u32 %v2361, 4294901760
        %2363 = vmatpush.msra.mxu0 %v2362
        %v2364 = vand.u32 %v1752, 4294901760
        %v2365 = vsub.f32 %v1752, %v2364
        %v2366 = vand.u32 %v2365, 4294901760
        %2367 = vmatpush.msra.mxu0 %v2366
        %v2368 = vand.u32 %v1751, 4294901760
        %v2369 = vsub.f32 %v1751, %v2368
        %v2370 = vand.u32 %v2369, 4294901760
        %2371 = vmatpush.msra.mxu0 %v2370
        %v2372 = vand.u32 %v1750, 4294901760
        %v2373 = vsub.f32 %v1750, %v2372
        %v2374 = vand.u32 %v2373, 4294901760
        %2375 = vmatpush.msra.mxu0 %v2374
        %v2376 = vand.u32 %v1749, 4294901760
        %v2377 = vsub.f32 %v1749, %v2376
        %v2378 = vand.u32 %v2377, 4294901760
        %2379 = vmatpush.msra.mxu0 %v2378
        %v2380 = vand.u32 %v1748, 4294901760
        %v2381 = vsub.f32 %v1748, %v2380
        %v2382 = vand.u32 %v2381, 4294901760
        %2383 = vmatpush.msra.mxu0 %v2382
        %v2384 = vand.u32 %v1747, 4294901760
        %v2385 = vsub.f32 %v1747, %v2384
        %v2386 = vand.u32 %v2385, 4294901760
        %2387 = vmatpush.msra.mxu0 %v2386
        %v2388 = vand.u32 %v1746, 4294901760
        %v2389 = vsub.f32 %v1746, %v2388
        %v2390 = vand.u32 %v2389, 4294901760
        %2391 = vmatpush.msra.mxu0 %v2390
        %v2392 = vand.u32 %v1745, 4294901760
        %v2393 = vsub.f32 %v1745, %v2392
        %v2394 = vand.u32 %v2393, 4294901760
        %2395 = vmatpush.msra.mxu0 %v2394
        %v2396 = vand.u32 %v1744, 4294901760
        %v2397 = vsub.f32 %v1744, %v2396
        %v2398 = vand.u32 %v2397, 4294901760
        %2399 = vmatpush.msra.mxu0 %v2398
        %v2400 = vand.u32 %v1726, 4294901760
        %2401 = vmatmul.f32.gmra.mxu0 %v2400
        %v2402 = vpop.f32.mrf.mxu0
        %v2403 = vadd.f32 %v2334, %v2402
        %2404 = vdwg.mxu0
        %v2405 = vand.u32 %v1759, 4294901760
        %2406 = vmatpush.msra.mxu0 %v2405
        %v2407 = vand.u32 %v1758, 4294901760
        %2408 = vmatpush.msra.mxu0 %v2407
        %v2409 = vand.u32 %v1757, 4294901760
        %2410 = vmatpush.msra.mxu0 %v2409
        %v2411 = vand.u32 %v1756, 4294901760
        %2412 = vmatpush.msra.mxu0 %v2411
        %v2413 = vand.u32 %v1755, 4294901760
        %2414 = vmatpush.msra.mxu0 %v2413
        %v2415 = vand.u32 %v1754, 4294901760
        %2416 = vmatpush.msra.mxu0 %v2415
        %v2417 = vand.u32 %v1753, 4294901760
        %2418 = vmatpush.msra.mxu0 %v2417
        %v2419 = vand.u32 %v1752, 4294901760
        %2420 = vmatpush.msra.mxu0 %v2419
        %v2421 = vand.u32 %v1751, 4294901760
        %2422 = vmatpush.msra.mxu0 %v2421
        %v2423 = vand.u32 %v1750, 4294901760
        %2424 = vmatpush.msra.mxu0 %v2423
        %v2425 = vand.u32 %v1749, 4294901760
        %2426 = vmatpush.msra.mxu0 %v2425
        %v2427 = vand.u32 %v1748, 4294901760
        %2428 = vmatpush.msra.mxu0 %v2427
        %v2429 = vand.u32 %v1747, 4294901760
        %2430 = vmatpush.msra.mxu0 %v2429
        %v2431 = vand.u32 %v1746, 4294901760
        %2432 = vmatpush.msra.mxu0 %v2431
        %v2433 = vand.u32 %v1745, 4294901760
        %2434 = vmatpush.msra.mxu0 %v2433
        %v2435 = vand.u32 %v1744, 4294901760
        %2436 = vmatpush.msra.mxu0 %v2435
        %v2437 = vand.u32 %v1726, 4294901760
        %2438 = vmatmul.f32.gmra.mxu0 %v2437
        %v2439 = vpop.f32.mrf.mxu0
        %v2440 = vadd.f32 %v2403, %v2439
        %2441 = vdwg.mxu0
        %v2442 = vadd.f32 %v1727, %v2440
        %2443 = vst [vmem:[#allocation2] sm:$0xff] %v2442
        // Predicated region
        $region49: #{tpu_custom_call.1} parent=31 // pred_check
          %p2444 = pneg %p251
        $region50: #{tpu_custom_call.1} parent=31 // pred_check_branch
          %2446 = sbr.rel (%p2444) target = $region52
        $region51: #{tpu_custom_call.1} parent=31 // pred_region
          %v2447 = vld [vmem:[#allocation2] sm:$0xff]
          %2448 = vst [vmem:[%s248] sm:$0xff] %v2447
        $region52: #{tpu_custom_call.1} parent=31 // pred_fallthru
          _
        %s2449 = sand.u32 %s119, 1
        %s2450 = scalar_lea.sflag [#allocation5], %s2449
        %s2451 = sand.u32 %s119, 1
        %s2452 = smul.addr %s2451, 8
        %s2453 = scalar_lea.vmem [#allocation9], %s2452
        // Predicated region
        $region53: #{tpu_custom_call.1} parent=31 // pred_check
          %p2454 = pneg %p129
        $region54: #{tpu_custom_call.1} parent=31 // pred_check_branch
          %2456 = sbr.rel (%p2454) target = $region56
        $region55: #{tpu_custom_call.1} parent=31 // pred_region
          %2458 = vsyncadd %s2450, 0
          %s2459 = smul.addr %s25, 8
          %s2460 = scalar_lea.hbm %s3, %s2459
          %s2462 = sshll.u32 %s2453, 4
          %s2463 = int_to_ptr.vmem [resolvable:$true] %s2462
          %s2464 = sshll.u32 %s2460, 4
          %s2465 = int_to_ptr.hbm [resolvable:$true] %s2464
          %2467 = dma.vmem_to_hbm [thread:$0]  %s2463, 128, %s2465, %s2450
        $region56: #{tpu_custom_call.1} parent=31 // pred_fallthru
          _
      $region32: #{tpu_custom_call.1} parent=5 // pred_fallthru
        _
      %p2468 = scmp.le.s32.totalorder 2, %s16
      // Predicated region
      $region57: #{tpu_custom_call.1} parent=5 // pred_check
        %p2469 = pneg %p2468
      $region58: #{tpu_custom_call.1} parent=5 // pred_check_branch
        %2471 = sbr.rel (%p2469) target = $region60
      $region59: #{tpu_custom_call.1} parent=5 // pred_region
        %s2472 = ssub.s32 %s16, 2
        // Predicated region
        $region61: #{tpu_custom_call.1} parent=59 // pred_check
          %p2473 = pneg %p135
        $region62: #{tpu_custom_call.1} parent=59 // pred_check_branch
          %2475 = sbr.rel (%p2473) target = $region64
        $region63: #{tpu_custom_call.1} parent=59 // pred_region
          %s2476 = sand.u32 %s120, 1
          %s2477 = scalar_lea.sflag [#allocation5], %s2476
          %s2478 = sand.u32 %s120, 1
          %s2479 = smul.addr %s2478, 8
          %s2480 = scalar_lea.vmem [#allocation9], %s2479
          %2482 = dma.done %s2477, 128
        $region64: #{tpu_custom_call.1} parent=59 // pred_fallthru
          _
      $region60: #{tpu_custom_call.1} parent=5 // pred_fallthru
        _
    $region6: #{tpu_custom_call.1} parent=1 // loop_footer
      %s20 = sadd.s32 1, %s16
    $region7: #{tpu_custom_call.1} parent=1 // loop_footer_branch
      %15 = sbr.rel target = $region3
    $region8: #{tpu_custom_call.1} parent=1 // loop_exit
      _
    %2483 = vsyncpa [#allocation4], 1
    %s2484 = scalar_lea.sflag [#allocation4], 1
    %2485 = vsyncpa %s2484, 1
    %2486 = vsyncpa [#allocation7], 1
    %2487 = vsyncpa [#allocation5], 1
    %s2488 = scalar_lea.sflag [#allocation5], 1
    %2489 = vsyncpa %s2488, 1

</llo_original>
